<compile_context>
chip_gen: v7x
topology: tpu7x:2x2x1
jax: 0.10.0
libtpu: 0.0.40
codegen_flags: <defaults>
</compile_context>

<pallas_src>
import functools
import math

import jax
import jax.numpy as jnp
from jax import lax
from jax.experimental import pallas as pl
from jax.experimental.pallas import tpu as pltpu

# ---- model hyper-params (match the PyTorch module constants) ----
VOCAB_SIZE = 256
EMBED_DIM = 32
NUM_HEADS = 2
MEM_SIZE = 50
HEAD_DIM = EMBED_DIM // NUM_HEADS
FF_DIM = 4 * EMBED_DIM
LN_EPS = 1e-5
ENT_EPS = 1e-10
MEM_PAD = 64            # fixed, 8-aligned memory capacity (>= MEM_SIZE + slack)
ENT_LANES = 128         # lane-dense entropy output
NEG_INF = -1e30

BF16 = jnp.bfloat16
F32 = jnp.float32

# ---- column layout of the packed bf16 weight slab, shape (E, W_COLS) ----
_WQ0, _WQ1 = 0, EMBED_DIM                        # q projection        (E, E)
_WKV0, _WKV1 = _WQ1, _WQ1 + 2 * EMBED_DIM        # k|v projection      (E, 2E)
_WO0, _WO1 = _WKV1, _WKV1 + EMBED_DIM            # out projection      (E, E)
_W10, _W11 = _WO1, _WO1 + FF_DIM                 # ff1                 (E, FF)
_W2T0, _W2T1 = _W11, _W11 + FF_DIM               # ff2 (used as h@W.T) (E, FF)
_WOUT0, _WOUT1 = _W2T1, _W2T1 + VOCAB_SIZE       # vocab head          (E, V)
W_COLS = _WOUT1                                  # 640

# ---- row layout of the packed f32 bias / LayerNorm slab, shape (10, 256) ----
(_BQ, _BKV, _BO, _LN1W, _LN1B, _B1, _B2, _LN2W, _LN2B, _BOUT) = range(10)
BIAS_ROWS, BIAS_COLS = 10, VOCAB_SIZE


# =====================================================================
# Fused kernel: embedding gather + MHA(+memory) + FF + vocab head
# =====================================================================
def _fused_kernel(bb, mem_len_ref, tok_ref, mem_ref, emb_tab_ref, w_ref, b_ref,
                  logits_ref, ent_ref, emb0_ref):
    R = tok_ref.shape[0]          # rows handled by this grid block (= bb * T)
    T = R // bb
    E, H, hd, V = EMBED_DIM, NUM_HEADS, HEAD_DIM, VOCAB_SIZE
    scale = 1.0 / math.sqrt(hd)
    mem_len = mem_len_ref[0]      # number of valid memory rows (SMEM scalar)

    # ---- embedding gather fused in-kernel: one-hot (R,V) @ table (V,E) ----
    tok = tok_ref[...]                                                # (R, 1) i32
    onehot = (lax.broadcasted_iota(jnp.int32, (R, V), 1) == tok).astype(F32)
    x = jnp.dot(onehot, emb_tab_ref[...], preferred_element_type=F32)  # (R, E)
    emb0_ref[...] = x[:T, :]      # local batch-0 embeddings (memory update path)

    # ---- unpack packed weight / bias slabs (static-offset views) ----
    wq = w_ref[:, _WQ0:_WQ1]
    wkv = w_ref[:, _WKV0:_WKV1]
    wo = w_ref[:, _WO0:_WO1]
    w1 = w_ref[:, _W10:_W11]
    w2t = w_ref[:, _W2T0:_W2T1]
    wout = w_ref[:, _WOUT0:_WOUT1]

    def brow(i, width):
        return b_ref[i:i + 1, :width]

    bq, bkv, bo = brow(_BQ, E), brow(_BKV, 2 * E), brow(_BO, E)
    ln1w, ln1b = brow(_LN1W, E), brow(_LN1B, E)
    b1, b2 = brow(_B1, FF_DIM), brow(_B2, E)
    ln2w, ln2b = brow(_LN2W, E), brow(_LN2B, E)
    bout = brow(_BOUT, V)

    # ---- fused projections (bf16 MXU, f32 accumulation) ----
    xb = x.astype(BF16)
    q_all = (jnp.dot(xb, wq, preferred_element_type=F32) + bq).astype(BF16)     # (R, E)
    kvx = (jnp.dot(xb, wkv, preferred_element_type=F32) + bkv).astype(BF16)     # (R, 2E)
    memb = mem_ref[...].astype(BF16)                                            # (MP, E)
    kvm = (jnp.dot(memb, wkv, preferred_element_type=F32) + bkv).astype(BF16)   # (MP, 2E)

    mem_valid = lax.broadcasted_iota(jnp.int32, (1, MEM_PAD), 1) < mem_len      # (1, MP)

    def dotT(a, b):   # (m,k) x (n,k) -> (m,n), f32 accumulation
        return lax.dot_general(a, b, (((1,), (1,)), ((), ())),
                               preferred_element_type=F32)

    o_rows = []
    ent0 = None
    for b_i in range(bb):                 # static loop over batches in this block
        r0 = b_i * T
        o_heads, ent_heads = [], []
        for h in range(H):                # static loop over heads
            c0 = h * hd
            qh = q_all[r0:r0 + T, c0:c0 + hd]
            kxh = kvx[r0:r0 + T, c0:c0 + hd]
            vxh = kvx[r0:r0 + T, E + c0:E + c0 + hd]
            kmh = kvm[:, c0:c0 + hd]
            vmh = kvm[:, E + c0:E + c0 + hd]

            # two-block attention (memory block + self block); padded memory
            # columns are masked, so the kernel also covers the mem_len == 0
            # (first call, k = v = x) case with the same compiled code.
            s_m = jnp.where(mem_valid, dotT(qh, kmh) * scale, NEG_INF)   # (T, MP)
            s_x = dotT(qh, kxh) * scale                                  # (T, T)

            m = jnp.maximum(jnp.max(s_m, -1, keepdims=True),
                            jnp.max(s_x, -1, keepdims=True))             # (T, 1)
            p_m = jnp.exp(s_m - m)
            p_x = jnp.exp(s_x - m)
            z = jnp.sum(p_m, -1, keepdims=True) + jnp.sum(p_x, -1, keepdims=True)
            inv_z = 1.0 / z                       # exact (feeds top-k retention)

            o_heads.append(
                (jnp.dot(p_m.astype(BF16), vmh, preferred_element_type=F32) +
                 jnp.dot(p_x.astype(BF16), vxh, preferred_element_type=F32)) * inv_z)

            if b_i == 0:
                # entropy in log-sum-exp form: H = log z - sum(p*(s-m)) / z
                num = (jnp.sum(p_m * (s_m - m), -1, keepdims=True) +
                       jnp.sum(p_x * (s_x - m), -1, keepdims=True))
                ent_heads.append(jnp.log(z) - num * inv_z)

        o_rows.append(jnp.concatenate(o_heads, axis=-1))                 # (T, E)
        if b_i == 0:
            ent0 = functools.reduce(jnp.maximum, ent_heads)              # (T, 1)

    o_cat = o_rows[0] if bb == 1 else jnp.concatenate(o_rows, axis=0)    # (R, E)
    attn_out = jnp.dot(o_cat.astype(BF16), wo, preferred_element_type=F32) + bo

    def layernorm(v, w_, b_):
        mu = jnp.mean(v, -1, keepdims=True)
        var = jnp.mean((v - mu) * (v - mu), -1, keepdims=True)
        return (v - mu) * lax.rsqrt(var + LN_EPS) * w_ + b_

    x2 = layernorm(x + attn_out, ln1w, ln1b)
    h1 = jnp.maximum(jnp.dot(x2.astype(BF16), w1, preferred_element_type=F32) + b1,
                     0.0)                                                 # ReLU
    ff = dotT(h1.astype(BF16), w2t) + b2
    out = layernorm(x2 + ff, ln2w, ln2b)

    logits_ref[...] = jnp.dot(out.astype(BF16), wout,
                              preferred_element_type=F32) + bout         # (R, V)
    # lane-dense store of per-token memory entropy (max over heads, batch 0)
    ent_ref[...] = jnp.broadcast_to(ent0, (T, ENT_LANES))


# =====================================================================
# Grid sizing: fold batch on single-TC chips, split across TCs on v7x.
# =====================================================================
def _tensorcores_per_chip():
    try:
        info = pltpu.get_tpu_info()
        for attr in ("num_cores", "core_count", "num_tensorcores"):
            v = getattr(info, attr, None)
            if isinstance(v, int) and v > 0:
                return v
    except Exception:
        pass
    try:
        dev = jax.devices()[0]
        for attr in ("num_cores", "core_count"):
            v = getattr(dev, attr, None)
            if isinstance(v, int) and v > 0:
                return v
    except Exception:
        pass
    return 1


def _num_batch_blocks(batch):
    g = max(1, min(batch, _tensorcores_per_chip()))
    while batch % g:
        g -= 1
    return g


# =====================================================================
# Full forward step (kernel + fixed-shape memory update), jit-friendly.
# =====================================================================
def xl_forward(tokens, mem_x, mem_ent, mem_len, emb_tab, wslab, bslab):
    B, T = tokens.shape
    V, E = VOCAB_SIZE, EMBED_DIM
    G = _num_batch_blocks(B)
    BB = B // G

    grid_spec = pltpu.PrefetchScalarGridSpec(
        num_scalar_prefetch=1,
        grid=(G,),
        in_specs=[
            pl.BlockSpec((BB * T, 1), lambda g, ml: (g, 0)),              # tokens
            pl.BlockSpec((MEM_PAD, E), lambda g, ml: (0, 0)),             # memory rows
            pl.BlockSpec((V, E), lambda g, ml: (0, 0)),                   # embed table
            pl.BlockSpec((E, W_COLS), lambda g, ml: (0, 0)),              # bf16 weights
            pl.BlockSpec((BIAS_ROWS, BIAS_COLS), lambda g, ml: (0, 0)),   # f32 biases/LN
        ],
        out_specs=[
            pl.BlockSpec((BB * T, V), lambda g, ml: (g, 0)),              # logits
            pl.BlockSpec((T, ENT_LANES), lambda g, ml: (g, 0)),           # entropy
            pl.BlockSpec((T, E), lambda g, ml: (g, 0)),                   # batch-0 emb
        ],
    )

    logits_flat, ent_pad, emb0 = pl.pallas_call(
        functools.partial(_fused_kernel, BB),
        grid_spec=grid_spec,
        out_shape=(
            jax.ShapeDtypeStruct((B * T, V), F32),
            jax.ShapeDtypeStruct((G * T, ENT_LANES), F32),
            jax.ShapeDtypeStruct((G * T, E), F32),
        ),
        compiler_params=pltpu.CompilerParams(
            dimension_semantics=("parallel",)),
    )(mem_len.reshape(1).astype(jnp.int32),
      tokens.reshape(B * T, 1).astype(jnp.int32),
      mem_x, emb_tab, wslab, bslab)

    logits = logits_flat.reshape(B, T, V)
    ent_tok = ent_pad[:T, 0]          # per-token entropy (batch 0, max over heads)
    x_det = emb0[:T, :]               # x.detach()[0]

    # ---- novelty-aware memory update (fixed-capacity buffers, branch-free) ----
    new_raw = mem_len + T
    buf_x = lax.dynamic_update_slice(mem_x, x_det, (mem_len, 0))
    buf_e = lax.dynamic_update_slice(mem_ent, ent_tok, (mem_len,))

    vals, idx = lax.top_k(buf_e, MEM_PAD)
    rank = jnp.arange(MEM_PAD)
    keep = (rank < MEM_SIZE) & jnp.isfinite(vals)
    kept_ent = jnp.sum(jnp.where(keep, vals, 0.0))
    total_ent = jnp.sum(jnp.where(jnp.isfinite(buf_e), buf_e, 0.0)) + ENT_EPS

    trimmed = new_raw > MEM_SIZE
    mem_x_new = jnp.where(trimmed, buf_x[idx], buf_x)
    mem_ent_new = jnp.where(trimmed, jnp.where(keep, vals, -jnp.inf), buf_e)
    mem_len_new = jnp.minimum(new_raw, MEM_SIZE)
    ratio = jnp.where(trimmed, kept_ent / total_ent, 1.0)

    return logits, ent_tok, mem_x_new, mem_ent_new, mem_len_new, ratio


# =====================================================================
# Parameter init (deterministic, PyTorch-shaped) + packed kernel layout
# =====================================================================
def init_params(key):
    E, V, FF = EMBED_DIM, VOCAB_SIZE, FF_DIM
    ks = jax.random.split(key, 12)
    return {
        "embed":      jax.random.normal(ks[0], (V, E), F32) * 0.1,
        "in_proj_w":  jax.random.normal(ks[1], (3 * E, E), F32) * 0.1,
        "in_proj_b":  jax.random.normal(ks[2], (3 * E,), F32) * 0.01,
        "out_proj_w": jax.random.normal(ks[3], (E, E), F32) * 0.1,
        "out_proj_b": jax.random.normal(ks[4], (E,), F32) * 0.01,
        "ln1_w":      1.0 + 0.1 * jax.random.normal(ks[5], (E,), F32),
        "ln1_b":      0.05 * jax.random.normal(ks[6], (E,), F32),
        "ff1_w":      jax.random.normal(ks[7], (FF, E), F32) * 0.1,
        "ff1_b":      jax.random.normal(ks[8], (FF,), F32) * 0.01,
        "ff2_w":      jax.random.normal(ks[9], (E, FF), F32) * 0.1,
        "ff2_b":      jax.random.normal(ks[10], (E,), F32) * 0.01,
        "ln2_w":      1.0 + 0.1 * jax.random.normal(ks[11], (E,), F32),
        "ln2_b":      jnp.zeros((E,), F32),
        "out_w":      jax.random.normal(jax.random.fold_in(key, 100), (V, E), F32) * 0.1,
        "out_b":      jax.random.normal(jax.random.fold_in(key, 101), (V,), F32) * 0.01,
    }


def pack_params(p):
    """Repack PyTorch-shaped params into the 3 kernel slabs."""
    E = EMBED_DIM
    Wq, Wk, Wv = p["in_proj_w"][:E], p["in_proj_w"][E:2 * E], p["in_proj_w"][2 * E:]
    bq, bk, bv = p["in_proj_b"][:E], p["in_proj_b"][E:2 * E], p["in_proj_b"][2 * E:]

    wslab = jnp.concatenate([
        Wq.T,                    # [0:32)
        Wk.T, Wv.T,              # [32:96)
        p["out_proj_w"].T,       # [96:128)
        p["ff1_w"].T,            # [128:256)
        p["ff2_w"],              # [256:384)  used as h @ W.T in-kernel
        p["out_w"].T,            # [384:640)
    ], axis=1).astype(BF16)
    assert wslab.shape == (E, W_COLS)

    def row(v):
        return jnp.pad(v, (0, BIAS_COLS - v.shape[0]))

    bslab = jnp.stack([
        row(bq), row(jnp.concatenate([bk, bv])), row(p["out_proj_b"]),
        row(p["ln1_w"]), row(p["ln1_b"]),
        row(p["ff1_b"]), row(p["ff2_b"]),
        row(p["ln2_w"]), row(p["ln2_b"]),
        row(p["out_b"]),
    ], axis=0).astype(F32)
    assert bslab.shape == (BIAS_ROWS, BIAS_COLS)

    emb_tab = p["embed"].astype(F32)
    return emb_tab, wslab, bslab


# =====================================================================
# Pure-JAX reference (PyTorch-equivalent f32 math) for correctness check
# =====================================================================
def reference_layer(emb, kv, p):
    B, T, E = emb.shape
    S = kv.shape[1]
    H, hd = NUM_HEADS, HEAD_DIM
    hp = jax.lax.Precision.HIGHEST
    mm = lambda a, b: jnp.matmul(a, b, precision=hp)

    q = mm(emb, p["in_proj_w"][:E].T) + p["in_proj_b"][:E]
    k = mm(kv, p["in_proj_w"][E:2 * E].T) + p["in_proj_b"][E:2 * E]
    v = mm(kv, p["in_proj_w"][2 * E:].T) + p["in_proj_b"][2 * E:]
    qh = q.reshape(B, T, H, hd).transpose(0, 2, 1, 3)
    kh = k.reshape(B, S, H, hd).transpose(0, 2, 1, 3)
    vh = v.reshape(B, S, H, hd).transpose(0, 2, 1, 3)
    scores = jnp.einsum("bhtd,bhsd->bhts", qh, kh, precision=hp) / math.sqrt(hd)
    w = jax.nn.softmax(scores, axis=-1)                              # (B, H, T, S)
    o = jnp.einsum("bhts,bhsd->bhtd", w, vh,
                   precision=hp).transpose(0, 2, 1, 3).reshape(B, T, E)
    attn_out = mm(o, p["out_proj_w"].T) + p["out_proj_b"]

    def ln(v_, w_, b_):
        mu = v_.mean(-1, keepdims=True)
        var = ((v_ - mu) ** 2).mean(-1, keepdims=True)
        return (v_ - mu) / jnp.sqrt(var + LN_EPS) * w_ + b_

    x2 = ln(emb + attn_out, p["ln1_w"], p["ln1_b"])
    ff = mm(jnp.maximum(mm(x2, p["ff1_w"].T) + p["ff1_b"], 0.0),
            p["ff2_w"].T) + p["ff2_b"]
    out = ln(x2 + ff, p["ln2_w"], p["ln2_b"])
    logits = mm(out, p["out_w"].T) + p["out_b"]
    ent = -(w * jnp.log(w + ENT_EPS)).sum(-1)                        # (B, H, T)
    return logits, ent


# =====================================================================
if __name__ == "__main__":
    key = jax.random.PRNGKey(0)
    p = init_params(key)
    emb_tab, wslab, bslab = pack_params(p)

    B, T = 2, 8
    mem_x = jnp.zeros((MEM_PAD, EMBED_DIM), F32)
    mem_ent = jnp.full((MEM_PAD,), -jnp.inf, F32)
    mem_len = jnp.array(0, jnp.int32)

    step = jax.jit(xl_forward)

    # --- call 1: empty memory (k = v = x) ---
    tokens1 = jax.random.randint(jax.random.fold_in(key, 7), (B, T), 0,
                                 VOCAB_SIZE, jnp.int32)
    logits1, ent1, mem_x, mem_ent, mem_len, ratio1 = step(
        tokens1, mem_x, mem_ent, mem_len, emb_tab, wslab, bslab)
    jax.block_until_ready(logits1)

    emb1 = jnp.take(p["embed"], tokens1, axis=0)
    ref_logits1, ref_ent1 = reference_layer(emb1, emb1, p)
    assert jnp.allclose(logits1, ref_logits1, atol=2e-2, rtol=2e-2), "call-1 logits mismatch"
    assert jnp.allclose(ent1, ref_ent1[0].max(axis=0), atol=2e-2, rtol=2e-2), \
        "call-1 entropy mismatch"
    assert int(mem_len) == T

    # --- call 2: with memory (k = v = [mem ; x]), same compiled kernel ---
    tokens2 = jax.random.randint(jax.random.fold_in(key, 8), (B, T), 0,
                                 VOCAB_SIZE, jnp.int32)
    logits2, ent2, mem_x2, mem_ent2, mem_len2, ratio2 = step(
        tokens2, mem_x, mem_ent, mem_len, emb_tab, wslab, bslab)
    jax.block_until_ready(logits2)

    emb2 = jnp.take(p["embed"], tokens2, axis=0)
    valid_mem = mem_x[:int(mem_len)]
    kv2 = jnp.concatenate(
        [jnp.broadcast_to(valid_mem[None], (B,) + valid_mem.shape), emb2], axis=1)
    ref_logits2, _ = reference_layer(emb2, kv2, p)
    assert jnp.allclose(logits2, ref_logits2, atol=2e-2, rtol=2e-2), "call-2 logits mismatch"

    assert logits2.shape == (B, T, VOCAB_SIZE)
    assert int(mem_len2) == 2 * T
    assert float(ratio1) == 1.0 and float(ratio2) == 1.0

    print("KERNEL_OK")
</pallas_src>

<mosaic_0001>
module attributes {stable_mosaic.version = 11 : i64} {
  func.func @_fused_kernel(%arg0: i32, %arg1: memref<1xi32, #tpu.memory_space<smem>>, %arg2: memref<16x1xi32, #tpu.memory_space<vmem>>, %arg3: memref<64x32xf32, #tpu.memory_space<vmem>>, %arg4: memref<256x32xf32, #tpu.memory_space<vmem>>, %arg5: memref<32x640xbf16, #tpu.memory_space<vmem>>, %arg6: memref<10x256xf32, #tpu.memory_space<vmem>>, %arg7: memref<16x256xf32, #tpu.memory_space<vmem>>, %arg8: memref<8x128xf32, #tpu.memory_space<vmem>>, %arg9: memref<8x32xf32, #tpu.memory_space<vmem>>) attributes {dimension_semantics = [#tpu.dimension_semantics<parallel>], iteration_bounds = array<i64: 1>, scalar_prefetch = 1 : i64, scratch_operands = 0 : i64, tpu.core_type = #tpu.core_type<tc>, window_params = [{transform_indices = @transform_0, window_bounds = array<i64: 16, 1>}, {pipeline_mode = #tpu.pipeline_mode<synchronous>, transform_indices = @transform_1, window_bounds = array<i64: 64, 32>}, {pipeline_mode = #tpu.pipeline_mode<synchronous>, transform_indices = @transform_2, window_bounds = array<i64: 256, 32>}, {pipeline_mode = #tpu.pipeline_mode<synchronous>, transform_indices = @transform_3, window_bounds = array<i64: 32, 640>}, {pipeline_mode = #tpu.pipeline_mode<synchronous>, transform_indices = @transform_4, window_bounds = array<i64: 10, 256>}, {transform_indices = @transform_5, window_bounds = array<i64: 16, 256>}, {transform_indices = @transform_6, window_bounds = array<i64: 8, 128>}, {transform_indices = @transform_7, window_bounds = array<i64: 8, 32>}]} {
    %c0 = arith.constant 0 : index
    %0 = memref.load %arg1[%c0] : memref<1xi32, #tpu.memory_space<smem>>
    %c0_0 = arith.constant 0 : index
    %c0_1 = arith.constant 0 : index
    %1 = vector.load %arg2[%c0_0, %c0_1] : memref<16x1xi32, #tpu.memory_space<vmem>>, vector<16x1xi32>
    %2 = tpu.iota {dimensions = array<i32: 1>} : vector<16x256xi32>
    %3 = vector.broadcast %1 : vector<16x1xi32> to vector<16x256xi32>
    %4 = arith.cmpi eq, %2, %3 : vector<16x256xi32>
    %5 = arith.extui %4 : vector<16x256xi1> to vector<16x256xi32>
    %6 = arith.sitofp %5 : vector<16x256xi32> to vector<16x256xf32>
    %c0_2 = arith.constant 0 : index
    %c0_3 = arith.constant 0 : index
    %7 = vector.load %arg4[%c0_2, %c0_3] : memref<256x32xf32, #tpu.memory_space<vmem>>, vector<256x32xf32>
    %cst = arith.constant dense<0.000000e+00> : vector<16x32xf32>
    %8 = tpu.matmul %6, %7, %cst {dimension_numbers = #tpu.dot_dimension_numbers<[1], [0], [0], [1], [0, 0, 1, 1], [], []>} : vector<16x256xf32>, vector<256x32xf32>, vector<16x32xf32> -> vector<16x32xf32>
    %9 = vector.extract_strided_slice %8 {offsets = [0, 0], sizes = [8, 32], strides = [1, 1]} : vector<16x32xf32> to vector<8x32xf32>
    %c0_4 = arith.constant 0 : index
    %c0_5 = arith.constant 0 : index
    %10 = vector.load %arg9[%c0_4, %c0_5] : memref<8x32xf32, #tpu.memory_space<vmem>>, vector<8x32xf32>
    tpu.vector_store %arg9[%c0_4, %c0_5], %9 {strides = array<i32>} : memref<8x32xf32, #tpu.memory_space<vmem>>, vector<8x32xf32>,
    %c0_6 = arith.constant 0 : index
    %c0_7 = arith.constant 0 : index
    %11 = vector.load %arg5[%c0_6, %c0_7] : memref<32x640xbf16, #tpu.memory_space<vmem>>, vector<32x32xbf16>
    %c0_8 = arith.constant 0 : index
    %c32 = arith.constant 32 : index
    %12 = vector.load %arg5[%c0_8, %c32] : memref<32x640xbf16, #tpu.memory_space<vmem>>, vector<32x64xbf16>
    %c0_9 = arith.constant 0 : index
    %c96 = arith.constant 96 : index
    %13 = vector.load %arg5[%c0_9, %c96] : memref<32x640xbf16, #tpu.memory_space<vmem>>, vector<32x32xbf16>
    %c0_10 = arith.constant 0 : index
    %c128 = arith.constant 128 : index
    %14 = vector.load %arg5[%c0_10, %c128] : memref<32x640xbf16, #tpu.memory_space<vmem>>, vector<32x128xbf16>
    %c0_11 = arith.constant 0 : index
    %c256 = arith.constant 256 : index
    %15 = vector.load %arg5[%c0_11, %c256] : memref<32x640xbf16, #tpu.memory_space<vmem>>, vector<32x128xbf16>
    %c0_12 = arith.constant 0 : index
    %c384 = arith.constant 384 : index
    %16 = vector.load %arg5[%c0_12, %c384] : memref<32x640xbf16, #tpu.memory_space<vmem>>, vector<32x256xbf16>
    %c0_13 = arith.constant 0 : index
    %c0_14 = arith.constant 0 : index
    %17 = vector.load %arg6[%c0_13, %c0_14] : memref<10x256xf32, #tpu.memory_space<vmem>>, vector<1x32xf32>
    %c1 = arith.constant 1 : index
    %c0_15 = arith.constant 0 : index
    %18 = vector.load %arg6[%c1, %c0_15] : memref<10x256xf32, #tpu.memory_space<vmem>>, vector<1x64xf32>
    %c2 = arith.constant 2 : index
    %c0_16 = arith.constant 0 : index
    %19 = vector.load %arg6[%c2, %c0_16] : memref<10x256xf32, #tpu.memory_space<vmem>>, vector<1x32xf32>
    %c3 = arith.constant 3 : index
    %c0_17 = arith.constant 0 : index
    %20 = vector.load %arg6[%c3, %c0_17] : memref<10x256xf32, #tpu.memory_space<vmem>>, vector<1x32xf32>
    %c4 = arith.constant 4 : index
    %c0_18 = arith.constant 0 : index
    %21 = vector.load %arg6[%c4, %c0_18] : memref<10x256xf32, #tpu.memory_space<vmem>>, vector<1x32xf32>
    %c5 = arith.constant 5 : index
    %c0_19 = arith.constant 0 : index
    %22 = vector.load %arg6[%c5, %c0_19] : memref<10x256xf32, #tpu.memory_space<vmem>>, vector<1x128xf32>
    %c6 = arith.constant 6 : index
    %c0_20 = arith.constant 0 : index
    %23 = vector.load %arg6[%c6, %c0_20] : memref<10x256xf32, #tpu.memory_space<vmem>>, vector<1x32xf32>
    %c7 = arith.constant 7 : index
    %c0_21 = arith.constant 0 : index
    %24 = vector.load %arg6[%c7, %c0_21] : memref<10x256xf32, #tpu.memory_space<vmem>>, vector<1x32xf32>
    %c8 = arith.constant 8 : index
    %c0_22 = arith.constant 0 : index
    %25 = vector.load %arg6[%c8, %c0_22] : memref<10x256xf32, #tpu.memory_space<vmem>>, vector<1x32xf32>
    %c9 = arith.constant 9 : index
    %c0_23 = arith.constant 0 : index
    %26 = vector.load %arg6[%c9, %c0_23] : memref<10x256xf32, #tpu.memory_space<vmem>>, vector<1x256xf32>
    %27 = arith.truncf %8 : vector<16x32xf32> to vector<16x32xbf16>
    %cst_24 = arith.constant dense<0.000000e+00> : vector<16x32xf32>
    %28 = tpu.matmul %27, %11, %cst_24 {dimension_numbers = #tpu.dot_dimension_numbers<[1], [0], [0], [1], [0, 0, 1, 1], [], []>} : vector<16x32xbf16>, vector<32x32xbf16>, vector<16x32xf32> -> vector<16x32xf32>
    %29 = vector.broadcast %17 : vector<1x32xf32> to vector<16x32xf32>
    %30 = arith.addf %28, %29 : vector<16x32xf32>
    %31 = arith.truncf %30 : vector<16x32xf32> to vector<16x32xbf16>
    %cst_25 = arith.constant dense<0.000000e+00> : vector<16x64xf32>
    %32 = tpu.matmul %27, %12, %cst_25 {dimension_numbers = #tpu.dot_dimension_numbers<[1], [0], [0], [1], [0, 0, 1, 1], [], []>} : vector<16x32xbf16>, vector<32x64xbf16>, vector<16x64xf32> -> vector<16x64xf32>
    %33 = vector.broadcast %18 : vector<1x64xf32> to vector<16x64xf32>
    %34 = arith.addf %32, %33 : vector<16x64xf32>
    %35 = arith.truncf %34 : vector<16x64xf32> to vector<16x64xbf16>
    %c0_26 = arith.constant 0 : index
    %c0_27 = arith.constant 0 : index
    %36 = vector.load %arg3[%c0_26, %c0_27] : memref<64x32xf32, #tpu.memory_space<vmem>>, vector<64x32xf32>
    %37 = arith.truncf %36 : vector<64x32xf32> to vector<64x32xbf16>
    %cst_28 = arith.constant dense<0.000000e+00> : vector<64x64xf32>
    %38 = tpu.matmul %37, %12, %cst_28 {dimension_numbers = #tpu.dot_dimension_numbers<[1], [0], [0], [1], [0, 0, 1, 1], [], []>} : vector<64x32xbf16>, vector<32x64xbf16>, vector<64x64xf32> -> vector<64x64xf32>
    %39 = vector.broadcast %18 : vector<1x64xf32> to vector<64x64xf32>
    %40 = arith.addf %38, %39 : vector<64x64xf32>
    %41 = arith.truncf %40 : vector<64x64xf32> to vector<64x64xbf16>
    %42 = tpu.iota {dimensions = array<i32: 1>} : vector<1x64xi32>
    %43 = vector.broadcast %0 : i32 to vector<1x64xi32>
    %44 = arith.cmpi slt, %42, %43 : vector<1x64xi32>
    %45 = vector.extract_strided_slice %31 {offsets = [0, 0], sizes = [8, 16], strides = [1, 1]} : vector<16x32xbf16> to vector<8x16xbf16>
    %46 = vector.extract_strided_slice %35 {offsets = [0, 0], sizes = [8, 16], strides = [1, 1]} : vector<16x64xbf16> to vector<8x16xbf16>
    %47 = vector.extract_strided_slice %35 {offsets = [0, 32], sizes = [8, 16], strides = [1, 1]} : vector<16x64xbf16> to vector<8x16xbf16>
    %48 = vector.extract_strided_slice %41 {offsets = [0, 0], sizes = [64, 16], strides = [1, 1]} : vector<64x64xbf16> to vector<64x16xbf16>
    %49 = vector.extract_strided_slice %41 {offsets = [0, 32], sizes = [64, 16], strides = [1, 1]} : vector<64x64xbf16> to vector<64x16xbf16>
    %cst_29 = arith.constant dense<0.000000e+00> : vector<8x64xf32>
    %50 = tpu.matmul %45, %48, %cst_29 {dimension_numbers = #tpu.dot_dimension_numbers<[1], [1], [0], [0], [0, 0, 1, 0], [], []>} : vector<8x16xbf16>, vector<64x16xbf16>, vector<8x64xf32> -> vector<8x64xf32>
    %cst_30 = arith.constant 2.500000e-01 : f32
    %51 = vector.broadcast %cst_30 : f32 to vector<8x64xf32>
    %52 = arith.mulf %50, %51 : vector<8x64xf32>
    %cst_31 = arith.constant -1.000000e+30 : f32
    %53 = vector.shape_cast %44 : vector<1x64xi1> to vector<1x64xi1>
    %54 = vector.broadcast %53 : vector<1x64xi1> to vector<8x64xi1>
    %55 = vector.broadcast %cst_31 : f32 to vector<8x64xf32>
    %56 = arith.select %54, %52, %55 : vector<8x64xi1>, vector<8x64xf32>
    %cst_32 = arith.constant dense<0.000000e+00> : vector<8x8xf32>
    %57 = tpu.matmul %45, %46, %cst_32 {dimension_numbers = #tpu.dot_dimension_numbers<[1], [1], [0], [0], [0, 0, 1, 0], [], []>} : vector<8x16xbf16>, vector<8x16xbf16>, vector<8x8xf32> -> vector<8x8xf32>
    %cst_33 = arith.constant 2.500000e-01 : f32
    %58 = vector.broadcast %cst_33 : f32 to vector<8x8xf32>
    %59 = arith.mulf %57, %58 : vector<8x8xf32>
    %cst_34 = arith.constant dense<0xFF800000> : vector<8xf32>
    %60 = vector.multi_reduction <maximumf>, %56, %cst_34 [1] : vector<8x64xf32> to vector<8xf32>
    %61 = vector.shape_cast %60 : vector<8xf32> to vector<8x1xf32>
    %cst_35 = arith.constant dense<0xFF800000> : vector<8xf32>
    %62 = vector.multi_reduction <maximumf>, %59, %cst_35 [1] : vector<8x8xf32> to vector<8xf32>
    %63 = vector.shape_cast %62 : vector<8xf32> to vector<8x1xf32>
    %64 = arith.maximumf %61, %63 : vector<8x1xf32>
    %65 = vector.broadcast %64 : vector<8x1xf32> to vector<8x64xf32>
    %66 = arith.subf %56, %65 : vector<8x64xf32>
    %67 = math.exp %66 : vector<8x64xf32>
    %68 = vector.broadcast %64 : vector<8x1xf32> to vector<8x8xf32>
    %69 = arith.subf %59, %68 : vector<8x8xf32>
    %70 = math.exp %69 : vector<8x8xf32>
    %cst_36 = arith.constant dense<0.000000e+00> : vector<8xf32>
    %71 = vector.multi_reduction <add>, %67, %cst_36 [1] : vector<8x64xf32> to vector<8xf32>
    %72 = vector.shape_cast %71 : vector<8xf32> to vector<8x1xf32>
    %cst_37 = arith.constant dense<0.000000e+00> : vector<8xf32>
    %73 = vector.multi_reduction <add>, %70, %cst_37 [1] : vector<8x8xf32> to vector<8xf32>
    %74 = vector.shape_cast %73 : vector<8xf32> to vector<8x1xf32>
    %75 = arith.addf %72, %74 : vector<8x1xf32>
    %cst_38 = arith.constant 1.000000e+00 : f32
    %76 = vector.broadcast %cst_38 : f32 to vector<8x1xf32>
    %77 = arith.divf %76, %75 : vector<8x1xf32>
    %78 = arith.truncf %67 : vector<8x64xf32> to vector<8x64xbf16>
    %cst_39 = arith.constant dense<0.000000e+00> : vector<8x16xf32>
    %79 = tpu.matmul %78, %49, %cst_39 {dimension_numbers = #tpu.dot_dimension_numbers<[1], [0], [0], [1], [0, 0, 1, 1], [], []>} : vector<8x64xbf16>, vector<64x16xbf16>, vector<8x16xf32> -> vector<8x16xf32>
    %80 = arith.truncf %70 : vector<8x8xf32> to vector<8x8xbf16>
    %cst_40 = arith.constant dense<0.000000e+00> : vector<8x16xf32>
    %81 = tpu.matmul %80, %47, %cst_40 {dimension_numbers = #tpu.dot_dimension_numbers<[1], [0], [0], [1], [0, 0, 1, 1], [], []>} : vector<8x8xbf16>, vector<8x16xbf16>, vector<8x16xf32> -> vector<8x16xf32>
    %82 = arith.addf %79, %81 : vector<8x16xf32>
    %83 = vector.broadcast %77 : vector<8x1xf32> to vector<8x16xf32>
    %84 = arith.mulf %82, %83 : vector<8x16xf32>
    %85 = vector.broadcast %64 : vector<8x1xf32> to vector<8x64xf32>
    %86 = arith.subf %56, %85 : vector<8x64xf32>
    %87 = arith.mulf %67, %86 : vector<8x64xf32>
    %cst_41 = arith.constant dense<0.000000e+00> : vector<8xf32>
    %88 = vector.multi_reduction <add>, %87, %cst_41 [1] : vector<8x64xf32> to vector<8xf32>
    %89 = vector.shape_cast %88 : vector<8xf32> to vector<8x1xf32>
    %90 = vector.broadcast %64 : vector<8x1xf32> to vector<8x8xf32>
    %91 = arith.subf %59, %90 : vector<8x8xf32>
    %92 = arith.mulf %70, %91 : vector<8x8xf32>
    %cst_42 = arith.constant dense<0.000000e+00> : vector<8xf32>
    %93 = vector.multi_reduction <add>, %92, %cst_42 [1] : vector<8x8xf32> to vector<8xf32>
    %94 = vector.shape_cast %93 : vector<8xf32> to vector<8x1xf32>
    %95 = arith.addf %89, %94 : vector<8x1xf32>
    %96 = math.log %75 : vector<8x1xf32>
    %97 = arith.mulf %95, %77 : vector<8x1xf32>
    %98 = arith.subf %96, %97 : vector<8x1xf32>
    %99 = vector.extract_strided_slice %31 {offsets = [0, 16], sizes = [8, 16], strides = [1, 1]} : vector<16x32xbf16> to vector<8x16xbf16>
    %100 = vector.extract_strided_slice %35 {offsets = [0, 16], sizes = [8, 16], strides = [1, 1]} : vector<16x64xbf16> to vector<8x16xbf16>
    %101 = vector.extract_strided_slice %35 {offsets = [0, 48], sizes = [8, 16], strides = [1, 1]} : vector<16x64xbf16> to vector<8x16xbf16>
    %102 = vector.extract_strided_slice %41 {offsets = [0, 16], sizes = [64, 16], strides = [1, 1]} : vector<64x64xbf16> to vector<64x16xbf16>
    %103 = vector.extract_strided_slice %41 {offsets = [0, 48], sizes = [64, 16], strides = [1, 1]} : vector<64x64xbf16> to vector<64x16xbf16>
    %cst_43 = arith.constant dense<0.000000e+00> : vector<8x64xf32>
    %104 = tpu.matmul %99, %102, %cst_43 {dimension_numbers = #tpu.dot_dimension_numbers<[1], [1], [0], [0], [0, 0, 1, 0], [], []>} : vector<8x16xbf16>, vector<64x16xbf16>, vector<8x64xf32> -> vector<8x64xf32>
    %cst_44 = arith.constant 2.500000e-01 : f32
    %105 = vector.broadcast %cst_44 : f32 to vector<8x64xf32>
    %106 = arith.mulf %104, %105 : vector<8x64xf32>
    %cst_45 = arith.constant -1.000000e+30 : f32
    %107 = vector.shape_cast %44 : vector<1x64xi1> to vector<1x64xi1>
    %108 = vector.broadcast %107 : vector<1x64xi1> to vector<8x64xi1>
    %109 = vector.broadcast %cst_45 : f32 to vector<8x64xf32>
    %110 = arith.select %108, %106, %109 : vector<8x64xi1>, vector<8x64xf32>
    %cst_46 = arith.constant dense<0.000000e+00> : vector<8x8xf32>
    %111 = tpu.matmul %99, %100, %cst_46 {dimension_numbers = #tpu.dot_dimension_numbers<[1], [1], [0], [0], [0, 0, 1, 0], [], []>} : vector<8x16xbf16>, vector<8x16xbf16>, vector<8x8xf32> -> vector<8x8xf32>
    %cst_47 = arith.constant 2.500000e-01 : f32
    %112 = vector.broadcast %cst_47 : f32 to vector<8x8xf32>
    %113 = arith.mulf %111, %112 : vector<8x8xf32>
    %cst_48 = arith.constant dense<0xFF800000> : vector<8xf32>
    %114 = vector.multi_reduction <maximumf>, %110, %cst_48 [1] : vector<8x64xf32> to vector<8xf32>
    %115 = vector.shape_cast %114 : vector<8xf32> to vector<8x1xf32>
    %cst_49 = arith.constant dense<0xFF800000> : vector<8xf32>
    %116 = vector.multi_reduction <maximumf>, %113, %cst_49 [1] : vector<8x8xf32> to vector<8xf32>
    %117 = vector.shape_cast %116 : vector<8xf32> to vector<8x1xf32>
    %118 = arith.maximumf %115, %117 : vector<8x1xf32>
    %119 = vector.broadcast %118 : vector<8x1xf32> to vector<8x64xf32>
    %120 = arith.subf %110, %119 : vector<8x64xf32>
    %121 = math.exp %120 : vector<8x64xf32>
    %122 = vector.broadcast %118 : vector<8x1xf32> to vector<8x8xf32>
    %123 = arith.subf %113, %122 : vector<8x8xf32>
    %124 = math.exp %123 : vector<8x8xf32>
    %cst_50 = arith.constant dense<0.000000e+00> : vector<8xf32>
    %125 = vector.multi_reduction <add>, %121, %cst_50 [1] : vector<8x64xf32> to vector<8xf32>
    %126 = vector.shape_cast %125 : vector<8xf32> to vector<8x1xf32>
    %cst_51 = arith.constant dense<0.000000e+00> : vector<8xf32>
    %127 = vector.multi_reduction <add>, %124, %cst_51 [1] : vector<8x8xf32> to vector<8xf32>
    %128 = vector.shape_cast %127 : vector<8xf32> to vector<8x1xf32>
    %129 = arith.addf %126, %128 : vector<8x1xf32>
    %cst_52 = arith.constant 1.000000e+00 : f32
    %130 = vector.broadcast %cst_52 : f32 to vector<8x1xf32>
    %131 = arith.divf %130, %129 : vector<8x1xf32>
    %132 = arith.truncf %121 : vector<8x64xf32> to vector<8x64xbf16>
    %cst_53 = arith.constant dense<0.000000e+00> : vector<8x16xf32>
    %133 = tpu.matmul %132, %103, %cst_53 {dimension_numbers = #tpu.dot_dimension_numbers<[1], [0], [0], [1], [0, 0, 1, 1], [], []>} : vector<8x64xbf16>, vector<64x16xbf16>, vector<8x16xf32> -> vector<8x16xf32>
    %134 = arith.truncf %124 : vector<8x8xf32> to vector<8x8xbf16>
    %cst_54 = arith.constant dense<0.000000e+00> : vector<8x16xf32>
    %135 = tpu.matmul %134, %101, %cst_54 {dimension_numbers = #tpu.dot_dimension_numbers<[1], [0], [0], [1], [0, 0, 1, 1], [], []>} : vector<8x8xbf16>, vector<8x16xbf16>, vector<8x16xf32> -> vector<8x16xf32>
    %136 = arith.addf %133, %135 : vector<8x16xf32>
    %137 = vector.broadcast %131 : vector<8x1xf32> to vector<8x16xf32>
    %138 = arith.mulf %136, %137 : vector<8x16xf32>
    %139 = vector.broadcast %118 : vector<8x1xf32> to vector<8x64xf32>
    %140 = arith.subf %110, %139 : vector<8x64xf32>
    %141 = arith.mulf %121, %140 : vector<8x64xf32>
    %cst_55 = arith.constant dense<0.000000e+00> : vector<8xf32>
    %142 = vector.multi_reduction <add>, %141, %cst_55 [1] : vector<8x64xf32> to vector<8xf32>
    %143 = vector.shape_cast %142 : vector<8xf32> to vector<8x1xf32>
    %144 = vector.broadcast %118 : vector<8x1xf32> to vector<8x8xf32>
    %145 = arith.subf %113, %144 : vector<8x8xf32>
    %146 = arith.mulf %124, %145 : vector<8x8xf32>
    %cst_56 = arith.constant dense<0.000000e+00> : vector<8xf32>
    %147 = vector.multi_reduction <add>, %146, %cst_56 [1] : vector<8x8xf32> to vector<8xf32>
    %148 = vector.shape_cast %147 : vector<8xf32> to vector<8x1xf32>
    %149 = arith.addf %143, %148 : vector<8x1xf32>
    %150 = math.log %129 : vector<8x1xf32>
    %151 = arith.mulf %149, %131 : vector<8x1xf32>
    %152 = arith.subf %150, %151 : vector<8x1xf32>
    %153 = tpu.concatenate %84, %138 in 1 : vector<8x16xf32>, vector<8x16xf32> -> vector<8x32xf32>
    %154 = arith.maximumf %98, %152 : vector<8x1xf32>
    %155 = vector.extract_strided_slice %31 {offsets = [8, 0], sizes = [8, 16], strides = [1, 1]} : vector<16x32xbf16> to vector<8x16xbf16>
    %156 = vector.extract_strided_slice %35 {offsets = [8, 0], sizes = [8, 16], strides = [1, 1]} : vector<16x64xbf16> to vector<8x16xbf16>
    %157 = vector.extract_strided_slice %35 {offsets = [8, 32], sizes = [8, 16], strides = [1, 1]} : vector<16x64xbf16> to vector<8x16xbf16>
    %158 = vector.extract_strided_slice %41 {offsets = [0, 0], sizes = [64, 16], strides = [1, 1]} : vector<64x64xbf16> to vector<64x16xbf16>
    %159 = vector.extract_strided_slice %41 {offsets = [0, 32], sizes = [64, 16], strides = [1, 1]} : vector<64x64xbf16> to vector<64x16xbf16>
    %cst_57 = arith.constant dense<0.000000e+00> : vector<8x64xf32>
    %160 = tpu.matmul %155, %158, %cst_57 {dimension_numbers = #tpu.dot_dimension_numbers<[1], [1], [0], [0], [0, 0, 1, 0], [], []>} : vector<8x16xbf16>, vector<64x16xbf16>, vector<8x64xf32> -> vector<8x64xf32>
    %cst_58 = arith.constant 2.500000e-01 : f32
    %161 = vector.broadcast %cst_58 : f32 to vector<8x64xf32>
    %162 = arith.mulf %160, %161 : vector<8x64xf32>
    %cst_59 = arith.constant -1.000000e+30 : f32
    %163 = vector.shape_cast %44 : vector<1x64xi1> to vector<1x64xi1>
    %164 = vector.broadcast %163 : vector<1x64xi1> to vector<8x64xi1>
    %165 = vector.broadcast %cst_59 : f32 to vector<8x64xf32>
    %166 = arith.select %164, %162, %165 : vector<8x64xi1>, vector<8x64xf32>
    %cst_60 = arith.constant dense<0.000000e+00> : vector<8x8xf32>
    %167 = tpu.matmul %155, %156, %cst_60 {dimension_numbers = #tpu.dot_dimension_numbers<[1], [1], [0], [0], [0, 0, 1, 0], [], []>} : vector<8x16xbf16>, vector<8x16xbf16>, vector<8x8xf32> -> vector<8x8xf32>
    %cst_61 = arith.constant 2.500000e-01 : f32
    %168 = vector.broadcast %cst_61 : f32 to vector<8x8xf32>
    %169 = arith.mulf %167, %168 : vector<8x8xf32>
    %cst_62 = arith.constant dense<0xFF800000> : vector<8xf32>
    %170 = vector.multi_reduction <maximumf>, %166, %cst_62 [1] : vector<8x64xf32> to vector<8xf32>
    %171 = vector.shape_cast %170 : vector<8xf32> to vector<8x1xf32>
    %cst_63 = arith.constant dense<0xFF800000> : vector<8xf32>
    %172 = vector.multi_reduction <maximumf>, %169, %cst_63 [1] : vector<8x8xf32> to vector<8xf32>
    %173 = vector.shape_cast %172 : vector<8xf32> to vector<8x1xf32>
    %174 = arith.maximumf %171, %173 : vector<8x1xf32>
    %175 = vector.broadcast %174 : vector<8x1xf32> to vector<8x64xf32>
    %176 = arith.subf %166, %175 : vector<8x64xf32>
    %177 = math.exp %176 : vector<8x64xf32>
    %178 = vector.broadcast %174 : vector<8x1xf32> to vector<8x8xf32>
    %179 = arith.subf %169, %178 : vector<8x8xf32>
    %180 = math.exp %179 : vector<8x8xf32>
    %cst_64 = arith.constant dense<0.000000e+00> : vector<8xf32>
    %181 = vector.multi_reduction <add>, %177, %cst_64 [1] : vector<8x64xf32> to vector<8xf32>
    %182 = vector.shape_cast %181 : vector<8xf32> to vector<8x1xf32>
    %cst_65 = arith.constant dense<0.000000e+00> : vector<8xf32>
    %183 = vector.multi_reduction <add>, %180, %cst_65 [1] : vector<8x8xf32> to vector<8xf32>
    %184 = vector.shape_cast %183 : vector<8xf32> to vector<8x1xf32>
    %185 = arith.addf %182, %184 : vector<8x1xf32>
    %cst_66 = arith.constant 1.000000e+00 : f32
    %186 = vector.broadcast %cst_66 : f32 to vector<8x1xf32>
    %187 = arith.divf %186, %185 : vector<8x1xf32>
    %188 = arith.truncf %177 : vector<8x64xf32> to vector<8x64xbf16>
    %cst_67 = arith.constant dense<0.000000e+00> : vector<8x16xf32>
    %189 = tpu.matmul %188, %159, %cst_67 {dimension_numbers = #tpu.dot_dimension_numbers<[1], [0], [0], [1], [0, 0, 1, 1], [], []>} : vector<8x64xbf16>, vector<64x16xbf16>, vector<8x16xf32> -> vector<8x16xf32>
    %190 = arith.truncf %180 : vector<8x8xf32> to vector<8x8xbf16>
    %cst_68 = arith.constant dense<0.000000e+00> : vector<8x16xf32>
    %191 = tpu.matmul %190, %157, %cst_68 {dimension_numbers = #tpu.dot_dimension_numbers<[1], [0], [0], [1], [0, 0, 1, 1], [], []>} : vector<8x8xbf16>, vector<8x16xbf16>, vector<8x16xf32> -> vector<8x16xf32>
    %192 = arith.addf %189, %191 : vector<8x16xf32>
    %193 = vector.broadcast %187 : vector<8x1xf32> to vector<8x16xf32>
    %194 = arith.mulf %192, %193 : vector<8x16xf32>
    %195 = vector.extract_strided_slice %31 {offsets = [8, 16], sizes = [8, 16], strides = [1, 1]} : vector<16x32xbf16> to vector<8x16xbf16>
    %196 = vector.extract_strided_slice %35 {offsets = [8, 16], sizes = [8, 16], strides = [1, 1]} : vector<16x64xbf16> to vector<8x16xbf16>
    %197 = vector.extract_strided_slice %35 {offsets = [8, 48], sizes = [8, 16], strides = [1, 1]} : vector<16x64xbf16> to vector<8x16xbf16>
    %198 = vector.extract_strided_slice %41 {offsets = [0, 16], sizes = [64, 16], strides = [1, 1]} : vector<64x64xbf16> to vector<64x16xbf16>
    %199 = vector.extract_strided_slice %41 {offsets = [0, 48], sizes = [64, 16], strides = [1, 1]} : vector<64x64xbf16> to vector<64x16xbf16>
    %cst_69 = arith.constant dense<0.000000e+00> : vector<8x64xf32>
    %200 = tpu.matmul %195, %198, %cst_69 {dimension_numbers = #tpu.dot_dimension_numbers<[1], [1], [0], [0], [0, 0, 1, 0], [], []>} : vector<8x16xbf16>, vector<64x16xbf16>, vector<8x64xf32> -> vector<8x64xf32>
    %cst_70 = arith.constant 2.500000e-01 : f32
    %201 = vector.broadcast %cst_70 : f32 to vector<8x64xf32>
    %202 = arith.mulf %200, %201 : vector<8x64xf32>
    %cst_71 = arith.constant -1.000000e+30 : f32
    %203 = vector.shape_cast %44 : vector<1x64xi1> to vector<1x64xi1>
    %204 = vector.broadcast %203 : vector<1x64xi1> to vector<8x64xi1>
    %205 = vector.broadcast %cst_71 : f32 to vector<8x64xf32>
    %206 = arith.select %204, %202, %205 : vector<8x64xi1>, vector<8x64xf32>
    %cst_72 = arith.constant dense<0.000000e+00> : vector<8x8xf32>
    %207 = tpu.matmul %195, %196, %cst_72 {dimension_numbers = #tpu.dot_dimension_numbers<[1], [1], [0], [0], [0, 0, 1, 0], [], []>} : vector<8x16xbf16>, vector<8x16xbf16>, vector<8x8xf32> -> vector<8x8xf32>
    %cst_73 = arith.constant 2.500000e-01 : f32
    %208 = vector.broadcast %cst_73 : f32 to vector<8x8xf32>
    %209 = arith.mulf %207, %208 : vector<8x8xf32>
    %cst_74 = arith.constant dense<0xFF800000> : vector<8xf32>
    %210 = vector.multi_reduction <maximumf>, %206, %cst_74 [1] : vector<8x64xf32> to vector<8xf32>
    %211 = vector.shape_cast %210 : vector<8xf32> to vector<8x1xf32>
    %cst_75 = arith.constant dense<0xFF800000> : vector<8xf32>
    %212 = vector.multi_reduction <maximumf>, %209, %cst_75 [1] : vector<8x8xf32> to vector<8xf32>
    %213 = vector.shape_cast %212 : vector<8xf32> to vector<8x1xf32>
    %214 = arith.maximumf %211, %213 : vector<8x1xf32>
    %215 = vector.broadcast %214 : vector<8x1xf32> to vector<8x64xf32>
    %216 = arith.subf %206, %215 : vector<8x64xf32>
    %217 = math.exp %216 : vector<8x64xf32>
    %218 = vector.broadcast %214 : vector<8x1xf32> to vector<8x8xf32>
    %219 = arith.subf %209, %218 : vector<8x8xf32>
    %220 = math.exp %219 : vector<8x8xf32>
    %cst_76 = arith.constant dense<0.000000e+00> : vector<8xf32>
    %221 = vector.multi_reduction <add>, %217, %cst_76 [1] : vector<8x64xf32> to vector<8xf32>
    %222 = vector.shape_cast %221 : vector<8xf32> to vector<8x1xf32>
    %cst_77 = arith.constant dense<0.000000e+00> : vector<8xf32>
    %223 = vector.multi_reduction <add>, %220, %cst_77 [1] : vector<8x8xf32> to vector<8xf32>
    %224 = vector.shape_cast %223 : vector<8xf32> to vector<8x1xf32>
    %225 = arith.addf %222, %224 : vector<8x1xf32>
    %cst_78 = arith.constant 1.000000e+00 : f32
    %226 = vector.broadcast %cst_78 : f32 to vector<8x1xf32>
    %227 = arith.divf %226, %225 : vector<8x1xf32>
    %228 = arith.truncf %217 : vector<8x64xf32> to vector<8x64xbf16>
    %cst_79 = arith.constant dense<0.000000e+00> : vector<8x16xf32>
    %229 = tpu.matmul %228, %199, %cst_79 {dimension_numbers = #tpu.dot_dimension_numbers<[1], [0], [0], [1], [0, 0, 1, 1], [], []>} : vector<8x64xbf16>, vector<64x16xbf16>, vector<8x16xf32> -> vector<8x16xf32>
    %230 = arith.truncf %220 : vector<8x8xf32> to vector<8x8xbf16>
    %cst_80 = arith.constant dense<0.000000e+00> : vector<8x16xf32>
    %231 = tpu.matmul %230, %197, %cst_80 {dimension_numbers = #tpu.dot_dimension_numbers<[1], [0], [0], [1], [0, 0, 1, 1], [], []>} : vector<8x8xbf16>, vector<8x16xbf16>, vector<8x16xf32> -> vector<8x16xf32>
    %232 = arith.addf %229, %231 : vector<8x16xf32>
    %233 = vector.broadcast %227 : vector<8x1xf32> to vector<8x16xf32>
    %234 = arith.mulf %232, %233 : vector<8x16xf32>
    %235 = tpu.concatenate %194, %234 in 1 : vector<8x16xf32>, vector<8x16xf32> -> vector<8x32xf32>
    %236 = tpu.concatenate %153, %235 in 0 : vector<8x32xf32>, vector<8x32xf32> -> vector<16x32xf32>
    %237 = arith.truncf %236 : vector<16x32xf32> to vector<16x32xbf16>
    %cst_81 = arith.constant dense<0.000000e+00> : vector<16x32xf32>
    %238 = tpu.matmul %237, %13, %cst_81 {dimension_numbers = #tpu.dot_dimension_numbers<[1], [0], [0], [1], [0, 0, 1, 1], [], []>} : vector<16x32xbf16>, vector<32x32xbf16>, vector<16x32xf32> -> vector<16x32xf32>
    %239 = vector.broadcast %19 : vector<1x32xf32> to vector<16x32xf32>
    %240 = arith.addf %238, %239 : vector<16x32xf32>
    %241 = arith.addf %8, %240 : vector<16x32xf32>
    %cst_82 = arith.constant dense<0.000000e+00> : vector<16xf32>
    %242 = vector.multi_reduction <add>, %241, %cst_82 [1] : vector<16x32xf32> to vector<16xf32>
    %243 = vector.shape_cast %242 : vector<16xf32> to vector<16x1xf32>
    %cst_83 = arith.constant 3.200000e+01 : f32
    %244 = vector.broadcast %cst_83 : f32 to vector<16x1xf32>
    %245 = arith.divf %243, %244 : vector<16x1xf32>
    %246 = vector.broadcast %245 : vector<16x1xf32> to vector<16x32xf32>
    %247 = arith.subf %241, %246 : vector<16x32xf32>
    %248 = vector.broadcast %245 : vector<16x1xf32> to vector<16x32xf32>
    %249 = arith.subf %241, %248 : vector<16x32xf32>
    %250 = arith.mulf %247, %249 : vector<16x32xf32>
    %cst_84 = arith.constant dense<0.000000e+00> : vector<16xf32>
    %251 = vector.multi_reduction <add>, %250, %cst_84 [1] : vector<16x32xf32> to vector<16xf32>
    %252 = vector.shape_cast %251 : vector<16xf32> to vector<16x1xf32>
    %cst_85 = arith.constant 3.200000e+01 : f32
    %253 = vector.broadcast %cst_85 : f32 to vector<16x1xf32>
    %254 = arith.divf %252, %253 : vector<16x1xf32>
    %255 = vector.broadcast %245 : vector<16x1xf32> to vector<16x32xf32>
    %256 = arith.subf %241, %255 : vector<16x32xf32>
    %cst_86 = arith.constant 9.99999974E-6 : f32
    %257 = vector.broadcast %cst_86 : f32 to vector<16x1xf32>
    %258 = arith.addf %254, %257 : vector<16x1xf32>
    %259 = math.rsqrt %258 : vector<16x1xf32>
    %260 = vector.broadcast %259 : vector<16x1xf32> to vector<16x32xf32>
    %261 = arith.mulf %256, %260 : vector<16x32xf32>
    %262 = vector.broadcast %20 : vector<1x32xf32> to vector<16x32xf32>
    %263 = arith.mulf %261, %262 : vector<16x32xf32>
    %264 = vector.broadcast %21 : vector<1x32xf32> to vector<16x32xf32>
    %265 = arith.addf %263, %264 : vector<16x32xf32>
    %266 = arith.truncf %265 : vector<16x32xf32> to vector<16x32xbf16>
    %cst_87 = arith.constant dense<0.000000e+00> : vector<16x128xf32>
    %267 = tpu.matmul %266, %14, %cst_87 {dimension_numbers = #tpu.dot_dimension_numbers<[1], [0], [0], [1], [0, 0, 1, 1], [], []>} : vector<16x32xbf16>, vector<32x128xbf16>, vector<16x128xf32> -> vector<16x128xf32>
    %268 = vector.broadcast %22 : vector<1x128xf32> to vector<16x128xf32>
    %269 = arith.addf %267, %268 : vector<16x128xf32>
    %cst_88 = arith.constant 0.000000e+00 : f32
    %270 = vector.broadcast %cst_88 : f32 to vector<16x128xf32>
    %271 = arith.maximumf %269, %270 : vector<16x128xf32>
    %272 = arith.truncf %271 : vector<16x128xf32> to vector<16x128xbf16>
    %cst_89 = arith.constant dense<0.000000e+00> : vector<16x32xf32>
    %273 = tpu.matmul %272, %15, %cst_89 {dimension_numbers = #tpu.dot_dimension_numbers<[1], [1], [0], [0], [0, 0, 1, 0], [], []>} : vector<16x128xbf16>, vector<32x128xbf16>, vector<16x32xf32> -> vector<16x32xf32>
    %274 = vector.broadcast %23 : vector<1x32xf32> to vector<16x32xf32>
    %275 = arith.addf %273, %274 : vector<16x32xf32>
    %276 = arith.addf %265, %275 : vector<16x32xf32>
    %cst_90 = arith.constant dense<0.000000e+00> : vector<16xf32>
    %277 = vector.multi_reduction <add>, %276, %cst_90 [1] : vector<16x32xf32> to vector<16xf32>
    %278 = vector.shape_cast %277 : vector<16xf32> to vector<16x1xf32>
    %cst_91 = arith.constant 3.200000e+01 : f32
    %279 = vector.broadcast %cst_91 : f32 to vector<16x1xf32>
    %280 = arith.divf %278, %279 : vector<16x1xf32>
    %281 = vector.broadcast %280 : vector<16x1xf32> to vector<16x32xf32>
    %282 = arith.subf %276, %281 : vector<16x32xf32>
    %283 = vector.broadcast %280 : vector<16x1xf32> to vector<16x32xf32>
    %284 = arith.subf %276, %283 : vector<16x32xf32>
    %285 = arith.mulf %282, %284 : vector<16x32xf32>
    %cst_92 = arith.constant dense<0.000000e+00> : vector<16xf32>
    %286 = vector.multi_reduction <add>, %285, %cst_92 [1] : vector<16x32xf32> to vector<16xf32>
    %287 = vector.shape_cast %286 : vector<16xf32> to vector<16x1xf32>
    %cst_93 = arith.constant 3.200000e+01 : f32
    %288 = vector.broadcast %cst_93 : f32 to vector<16x1xf32>
    %289 = arith.divf %287, %288 : vector<16x1xf32>
    %290 = vector.broadcast %280 : vector<16x1xf32> to vector<16x32xf32>
    %291 = arith.subf %276, %290 : vector<16x32xf32>
    %cst_94 = arith.constant 9.99999974E-6 : f32
    %292 = vector.broadcast %cst_94 : f32 to vector<16x1xf32>
    %293 = arith.addf %289, %292 : vector<16x1xf32>
    %294 = math.rsqrt %293 : vector<16x1xf32>
    %295 = vector.broadcast %294 : vector<16x1xf32> to vector<16x32xf32>
    %296 = arith.mulf %291, %295 : vector<16x32xf32>
    %297 = vector.broadcast %24 : vector<1x32xf32> to vector<16x32xf32>
    %298 = arith.mulf %296, %297 : vector<16x32xf32>
    %299 = vector.broadcast %25 : vector<1x32xf32> to vector<16x32xf32>
    %300 = arith.addf %298, %299 : vector<16x32xf32>
    %301 = arith.truncf %300 : vector<16x32xf32> to vector<16x32xbf16>
    %cst_95 = arith.constant dense<0.000000e+00> : vector<16x256xf32>
    %302 = tpu.matmul %301, %16, %cst_95 {dimension_numbers = #tpu.dot_dimension_numbers<[1], [0], [0], [1], [0, 0, 1, 1], [], []>} : vector<16x32xbf16>, vector<32x256xbf16>, vector<16x256xf32> -> vector<16x256xf32>
    %303 = vector.broadcast %26 : vector<1x256xf32> to vector<16x256xf32>
    %304 = arith.addf %302, %303 : vector<16x256xf32>
    %c0_96 = arith.constant 0 : index
    %c0_97 = arith.constant 0 : index
    %305 = vector.load %arg7[%c0_96, %c0_97] : memref<16x256xf32, #tpu.memory_space<vmem>>, vector<16x256xf32>
    tpu.vector_store %arg7[%c0_96, %c0_97], %304 {strides = array<i32>} : memref<16x256xf32, #tpu.memory_space<vmem>>, vector<16x256xf32>,
    %306 = vector.shape_cast %154 : vector<8x1xf32> to vector<8x1xf32>
    %307 = vector.broadcast %306 : vector<8x1xf32> to vector<8x128xf32>
    %c0_98 = arith.constant 0 : index
    %c0_99 = arith.constant 0 : index
    %308 = vector.load %arg8[%c0_98, %c0_99] : memref<8x128xf32, #tpu.memory_space<vmem>>, vector<8x128xf32>
    tpu.vector_store %arg8[%c0_98, %c0_99], %307 {strides = array<i32>} : memref<8x128xf32, #tpu.memory_space<vmem>>, vector<8x128xf32>,
    return
  }
  func.func @transform_0(%arg0: i32, %arg1: memref<1xi32, #tpu.memory_space<smem>>) -> (i32, i32) {
    %c0_i32 = arith.constant 0 : i32
    %c0_i32_0 = arith.constant 0 : i32
    return %arg0, %c0_i32 : i32, i32
  }
  func.func @transform_1(%arg0: i32, %arg1: memref<1xi32, #tpu.memory_space<smem>>) -> (i32, i32) {
    %c0_i32 = arith.constant 0 : i32
    %c0_i32_0 = arith.constant 0 : i32
    %c0_i32_1 = arith.constant 0 : i32
    return %c0_i32, %c0_i32_0 : i32, i32
  }
  func.func @transform_2(%arg0: i32, %arg1: memref<1xi32, #tpu.memory_space<smem>>) -> (i32, i32) {
    %c0_i32 = arith.constant 0 : i32
    %c0_i32_0 = arith.constant 0 : i32
    %c0_i32_1 = arith.constant 0 : i32
    return %c0_i32, %c0_i32_0 : i32, i32
  }
  func.func @transform_3(%arg0: i32, %arg1: memref<1xi32, #tpu.memory_space<smem>>) -> (i32, i32) {
    %c0_i32 = arith.constant 0 : i32
    %c0_i32_0 = arith.constant 0 : i32
    %c0_i32_1 = arith.constant 0 : i32
    return %c0_i32, %c0_i32_0 : i32, i32
  }
  func.func @transform_4(%arg0: i32, %arg1: memref<1xi32, #tpu.memory_space<smem>>) -> (i32, i32) {
    %c0_i32 = arith.constant 0 : i32
    %c0_i32_0 = arith.constant 0 : i32
    %c0_i32_1 = arith.constant 0 : i32
    return %c0_i32, %c0_i32_0 : i32, i32
  }
  func.func @transform_5(%arg0: i32, %arg1: memref<1xi32, #tpu.memory_space<smem>>) -> (i32, i32) {
    %c0_i32 = arith.constant 0 : i32
    %c0_i32_0 = arith.constant 0 : i32
    return %arg0, %c0_i32 : i32, i32
  }
  func.func @transform_6(%arg0: i32, %arg1: memref<1xi32, #tpu.memory_space<smem>>) -> (i32, i32) {
    %c0_i32 = arith.constant 0 : i32
    %c0_i32_0 = arith.constant 0 : i32
    return %arg0, %c0_i32 : i32, i32
  }
  func.func @transform_7(%arg0: i32, %arg1: memref<1xi32, #tpu.memory_space<smem>>) -> (i32, i32) {
    %c0_i32 = arith.constant 0 : i32
    %c0_i32_0 = arith.constant 0 : i32
    return %arg0, %c0_i32 : i32, i32
  }
}

</mosaic_0001>

<llo_original>
// kernel: xl_forward.1
$region0: #{xl_forward.1}
  #allocation0 [shape = 'u32[]', space=smem, size = 0x4, offset = 0x4, fixed_abs, tag = 'smem constant byte address 0x4 - core index']
  #allocation1 [shape = 'u32[144,128]{1,0:T(1,128)}', space=vmem, size = 0x12000, scoped, tag = 'internal scratch']
  #allocation2 [shape = 's32[1]{0}', space=sflag, size = 0x4, scoped, tag = 'scoped memory for xl_forward.1']
  #allocation3 [shape = 's32[1]{0:T(128)S(6)}', space=smem, size = 0x200, scoped, tag = 'prefetched SMEM operand 0']
  %s0 = inlined_call_operand.<no memory space> [shape: s32[1], index: 0, kind: input, shape index: {}]
  %s1 = inlined_call_operand.vmem [shape: s32[16,1], index: 1, kind: input, shape index: {}]
  %s2 = inlined_call_operand.vmem [shape: f32[64,32], index: 2, kind: input, shape index: {}]
  %s3 = inlined_call_operand.vmem [shape: f32[256,32], index: 3, kind: input, shape index: {}]
  %s4 = inlined_call_operand.vmem [shape: bf16[32,640], index: 4, kind: input, shape index: {}]
  %s5 = inlined_call_operand.vmem [shape: f32[10,256], index: 5, kind: input, shape index: {}]
  %s6 = inlined_call_operand.hbm [shape: f32[16,256], index: 6, kind: output, shape index: {0}]
  %s7 = inlined_call_operand.vmem [shape: f32[8,128], index: 7, kind: output, shape index: {1}]
  %s8 = inlined_call_operand.vmem [shape: f32[8,32], index: 8, kind: output, shape index: {2}]
  %9 = xla_tuple %s6, %s7, %s8
  %s10 = sld [smem:[#allocation0]]
  $region46: #{xl_forward.1} parent=0
    _
  %s12 = ssub.s32 1, %s10
  %s13 = scalar_select 0, %s12, %s10
  %14 = sst [smem:[#allocation3]] %s0
  $region1: #{xl_forward.1} parent=0
    #allocation4 [shape = 'u8[16384]{0}', space=vmem, size = 0x4000, scoped, tag = 'output window, operand 0, single buffered']
    #allocation5 [shape = 's32[1]{0}', space=sflag, size = 0x4, scoped, tag = 'scoped memory for xl_forward.1']
    %15 = vsyncpa [#allocation5], 0
    // Predicated region
    $region2: #{xl_forward.1} parent=1 // pred_check
      _
    $region3: #{xl_forward.1} parent=1 // pred_check_branch
      %17 = sbr.rel (0) target = $region5
    $region4: #{xl_forward.1} parent=1 // pred_region
      _
    $region5: #{xl_forward.1} parent=1 // pred_fallthru
      _
    // Predicated region
    $region6: #{xl_forward.1} parent=1 // pred_check
      _
    $region7: #{xl_forward.1} parent=1 // pred_check_branch
      %19 = sbr.rel (0) target = $region9
    $region8: #{xl_forward.1} parent=1 // pred_region
      _
    $region9: #{xl_forward.1} parent=1 // pred_fallthru
      _
    // Predicated region
    $region10: #{xl_forward.1} parent=1 // pred_check
      _
    $region11: #{xl_forward.1} parent=1 // pred_check_branch
      %21 = sbr.rel (0) target = $region13
    $region12: #{xl_forward.1} parent=1 // pred_region
      _
    $region13: #{xl_forward.1} parent=1 // pred_fallthru
      _
    // Predicated region
    $region14: #{xl_forward.1} parent=1 // pred_check
      _
    $region15: #{xl_forward.1} parent=1 // pred_check_branch
      %23 = sbr.rel (0) target = $region17
    $region16: #{xl_forward.1} parent=1 // pred_region
      _
    $region17: #{xl_forward.1} parent=1 // pred_fallthru
      _
    // Predicated region
    $region18: #{xl_forward.1} parent=1 // pred_check
      _
    $region19: #{xl_forward.1} parent=1 // pred_check_branch
      %25 = sbr.rel (0) target = $region21
    $region20: #{xl_forward.1} parent=1 // pred_region
      _
    $region21: #{xl_forward.1} parent=1 // pred_fallthru
      _
    %s27 = sld [smem:[#allocation3]]
    %v28 = vld [vmem:[%s1] sm:$0xff]
    %v29 = vld [vmem:[%s1 + $0x8] sm:$0xff]
    %v30 = vlaneseq
    %v31 = vand.u32 %v30, 127
    %v32 = vadd.s32 %v31, 128
    %33 = vset.pattern.permute.xlu0 0
    %34 = vperm.xlu0 %33, %v28
    %v35 = vpop.permute.xlu0 %34
    %36 = vset.pattern.permute.xlu0 0
    %37 = vperm.xlu0 %36, %v29
    %v38 = vpop.permute.xlu0 %37
    %vm39 = vcmp.eq.s32.totalorder %v31, %v35
    %vm40 = vcmp.eq.s32.totalorder %v32, %v35
    %vm41 = vcmp.eq.s32.totalorder %v31, %v38
    %vm42 = vcmp.eq.s32.totalorder %v32, %v38
    %v43 = vsel %vm39, 1, 0
    %v44 = vsel %vm40, 1, 0
    %v45 = vsel %vm41, 1, 0
    %v46 = vsel %vm42, 1, 0
    %v47 = vcvt.s32.f32 %v43
    %v48 = vcvt.s32.f32 %v44
    %v49 = vcvt.s32.f32 %v45
    %v50 = vcvt.s32.f32 %v46
    %v51 = vld [vmem:[%s3] sm:$0xff]
    %v52 = vld [vmem:[%s3 + $0x8] sm:$0xff]
    %v53 = vld [vmem:[%s3 + $0x10] sm:$0xff]
    %v54 = vld [vmem:[%s3 + $0x18] sm:$0xff]
    %v55 = vld [vmem:[%s3 + $0x20] sm:$0xff]
    %v56 = vld [vmem:[%s3 + $0x28] sm:$0xff]
    %v57 = vld [vmem:[%s3 + $0x30] sm:$0xff]
    %v58 = vld [vmem:[%s3 + $0x38] sm:$0xff]
    %v59 = vld [vmem:[%s3 + $0x40] sm:$0xff]
    %v60 = vld [vmem:[%s3 + $0x48] sm:$0xff]
    %v61 = vld [vmem:[%s3 + $0x50] sm:$0xff]
    %v62 = vld [vmem:[%s3 + $0x58] sm:$0xff]
    %v63 = vld [vmem:[%s3 + $0x60] sm:$0xff]
    %v64 = vld [vmem:[%s3 + $0x68] sm:$0xff]
    %v65 = vld [vmem:[%s3 + $0x70] sm:$0xff]
    %v66 = vld [vmem:[%s3 + $0x78] sm:$0xff]
    %v67 = vld [vmem:[%s3 + $0x80] sm:$0xff]
    %v68 = vld [vmem:[%s3 + $0x88] sm:$0xff]
    %v69 = vld [vmem:[%s3 + $0x90] sm:$0xff]
    %v70 = vld [vmem:[%s3 + $0x98] sm:$0xff]
    %v71 = vld [vmem:[%s3 + $0xa0] sm:$0xff]
    %v72 = vld [vmem:[%s3 + $0xa8] sm:$0xff]
    %v73 = vld [vmem:[%s3 + $0xb0] sm:$0xff]
    %v74 = vld [vmem:[%s3 + $0xb8] sm:$0xff]
    %v75 = vld [vmem:[%s3 + $0xc0] sm:$0xff]
    %v76 = vld [vmem:[%s3 + $0xc8] sm:$0xff]
    %v77 = vld [vmem:[%s3 + $0xd0] sm:$0xff]
    %v78 = vld [vmem:[%s3 + $0xd8] sm:$0xff]
    %v79 = vld [vmem:[%s3 + $0xe0] sm:$0xff]
    %v80 = vld [vmem:[%s3 + $0xe8] sm:$0xff]
    %v81 = vld [vmem:[%s3 + $0xf0] sm:$0xff]
    %v82 = vld [vmem:[%s3 + $0xf8] sm:$0xff]
    %83 = vmatprep.subr.mxu0 0.0
    %84 = vmatpush1.msra.mxu0 %v51
    %85 = vmatprep.subr.mxu0 0.0
    %86 = vmatpush1.msra.mxu0 %v52
    %87 = vmatprep.subr.mxu0 0.0
    %88 = vmatpush1.msra.mxu0 %v53
    %89 = vmatprep.subr.mxu0 0.0
    %90 = vmatpush1.msra.mxu0 %v54
    %91 = vmatprep.subr.mxu0 0.0
    %92 = vmatpush1.msra.mxu0 %v55
    %93 = vmatprep.subr.mxu0 0.0
    %94 = vmatpush1.msra.mxu0 %v56
    %95 = vmatprep.subr.mxu0 0.0
    %96 = vmatpush1.msra.mxu0 %v57
    %97 = vmatprep.subr.mxu0 0.0
    %98 = vmatpush1.msra.mxu0 %v58
    %99 = vmatprep.subr.mxu0 0.0
    %100 = vmatpush1.msra.mxu0 %v59
    %101 = vmatprep.subr.mxu0 0.0
    %102 = vmatpush1.msra.mxu0 %v60
    %103 = vmatprep.subr.mxu0 0.0
    %104 = vmatpush1.msra.mxu0 %v61
    %105 = vmatprep.subr.mxu0 0.0
    %106 = vmatpush1.msra.mxu0 %v62
    %107 = vmatprep.subr.mxu0 0.0
    %108 = vmatpush1.msra.mxu0 %v63
    %109 = vmatprep.subr.mxu0 0.0
    %110 = vmatpush1.msra.mxu0 %v64
    %111 = vmatprep.subr.mxu0 0.0
    %112 = vmatpush1.msra.mxu0 %v65
    %113 = vmatprep.subr.mxu0 0.0
    %114 = vmatpush1.msra.mxu0 %v66
    %115 = vmatprep.subr.mxu0 0.0
    %116 = vmatpush1.msra.mxu0 %v67
    %117 = vmatprep.subr.mxu0 0.0
    %118 = vmatpush1.msra.mxu0 %v68
    %119 = vmatprep.subr.mxu0 0.0
    %120 = vmatpush1.msra.mxu0 %v69
    %121 = vmatprep.subr.mxu0 0.0
    %122 = vmatpush1.msra.mxu0 %v70
    %123 = vmatprep.subr.mxu0 0.0
    %124 = vmatpush1.msra.mxu0 %v71
    %125 = vmatprep.subr.mxu0 0.0
    %126 = vmatpush1.msra.mxu0 %v72
    %127 = vmatprep.subr.mxu0 0.0
    %128 = vmatpush1.msra.mxu0 %v73
    %129 = vmatprep.subr.mxu0 0.0
    %130 = vmatpush1.msra.mxu0 %v74
    %131 = vmatprep.subr.mxu0 0.0
    %132 = vmatpush1.msra.mxu0 %v75
    %133 = vmatprep.subr.mxu0 0.0
    %134 = vmatpush1.msra.mxu0 %v76
    %135 = vmatprep.subr.mxu0 0.0
    %136 = vmatpush1.msra.mxu0 %v77
    %137 = vmatprep.subr.mxu0 0.0
    %138 = vmatpush1.msra.mxu0 %v78
    %139 = vmatprep.subr.mxu0 0.0
    %140 = vmatpush1.msra.mxu0 %v79
    %141 = vmatprep.subr.mxu0 0.0
    %142 = vmatpush1.msra.mxu0 %v80
    %143 = vmatprep.subr.mxu0 0.0
    %144 = vmatpush1.msra.mxu0 %v81
    %145 = vmatprep.subr.mxu0 0.0
    %146 = vmatpush1.msra.mxu0 %v82
    %147 = vmatprep.mubr.f32.mxu0 %v48
    %148 = vmatmul.mubr.f32.gmra.mrb[0].mxu0 %v47
    %v149 = vpop.f32.mrb[0].mxu0
    %v150 = vadd.f32 0.0, %v149
    %v151 = vpop.f32.mrb[0].mxu0
    %152 = vmatprep.mubr.f32.mxu0 %v50
    %153 = vmatmul.mubr.f32.gmra.mrb[0].mxu0 %v49
    %v154 = vpop.f32.mrb[0].mxu0
    %v155 = vadd.f32 0.0, %v154
    %v156 = vpop.f32.mrb[0].mxu0
    %157 = vdwg.mxu0
    %vm158 = vcmask 261120
    %159 = vst.msk [vmem:[%s8] sm:$0xff] %vm158, %v150
    %v160 = vld [vmem:[%s4] sm:$0xf]
    %v161 = vld [vmem:[%s4 + $0x14] sm:$0xf]
    %v162 = vld [vmem:[%s4 + $0x28] sm:$0xf]
    %v163 = vld [vmem:[%s4 + $0x3c] sm:$0xf]
    %v164 = vld [vmem:[%s4 + $0x4] sm:$0xf]
    %v165 = vld [vmem:[%s4 + $0x18] sm:$0xf]
    %v166 = vld [vmem:[%s4 + $0x2c] sm:$0xf]
    %v167 = vld [vmem:[%s4 + $0x40] sm:$0xf]
    %v168 = vld [vmem:[%s4 + $0x8] sm:$0xf]
    %v169 = vld [vmem:[%s4 + $0x1c] sm:$0xf]
    %v170 = vld [vmem:[%s4 + $0x30] sm:$0xf]
    %v171 = vld [vmem:[%s4 + $0x44] sm:$0xf]
    %v172 = vld [vmem:[%s4 + $0xc] sm:$0xff]
    %v173 = vld [vmem:[%s4 + $0x20] sm:$0xff]
    %v174 = vld [vmem:[%s4 + $0x34] sm:$0xff]
    %v175 = vld [vmem:[%s4 + $0x48] sm:$0xff]
    %v176 = vld [vmem:[%s5] ss:$0 sm:$0xff]
    %v177 = vld [vmem:[%s5 + $0x1] ss:$0 sm:$0xff]
    %v178 = vld [vmem:[%s5 + $0x2] ss:$0 sm:$0xff]
    %v179 = vld [vmem:[%s5 + $0x3] ss:$0 sm:$0xff]
    %v180 = vld [vmem:[%s5 + $0x4] ss:$0 sm:$0xff]
    %v181 = vld [vmem:[%s5 + $0x5] ss:$0 sm:$0xff]
    %v182 = vld [vmem:[%s5 + $0x6] ss:$0 sm:$0xff]
    %v183 = vld [vmem:[%s5 + $0x7] ss:$0 sm:$0xff]
    %v184 = vld [vmem:[%s5 + $0x10] ss:$0 sm:$0xff]
    %s185 = scalar_lea.vmem %s5, 17
    %v186 = vld [vmem:[%s185] ss:$8 sm:$0x3]
    %v187 = vpack.c.bf16 %v155, %v150
    %v192 = vunpack.c.l.b16 %v160
    %v193 = vunpack.c.l.b16 %v161
    %v194 = vunpack.c.l.b16 %v162
    %v195 = vunpack.c.l.b16 %v163
    %v196 = vpack.c.b16 %v193, %v192
    %v197 = vpack.c.b16 %v195, %v194
    %v201 = vsel %vm158, %v187, 0
    %203 = vmatprep.subr.bf16.mxu0 0
    %204 = vmatpush1.bf16.msra.mxu0 %v196
    %205 = vmatprep.subr.bf16.mxu0 0
    %206 = vmatpush1.bf16.msra.mxu0 %v197
    %207 = vmatprep.subr.bf16.mxu0 0
    %208 = vmatpush1.bf16.msra.mxu0 0
    %209 = vmatprep.subr.bf16.mxu0 0
    %210 = vmatpush1.bf16.msra.mxu0 0
    %211 = vmatprep.subr.bf16.mxu0 0
    %212 = vmatpush1.bf16.msra.mxu0 0
    %213 = vmatprep.subr.bf16.mxu0 0
    %214 = vmatpush1.bf16.msra.mxu0 0
    %215 = vmatprep.subr.bf16.mxu0 0
    %216 = vmatpush1.bf16.msra.mxu0 0
    %217 = vmatprep.subr.bf16.mxu0 0
    %218 = vmatpush1.bf16.msra.mxu0 0
    %219 = vmatprep.subr.bf16.mxu0 0
    %220 = vmatpush1.bf16.msra.mxu0 0
    %221 = vmatprep.subr.bf16.mxu0 0
    %222 = vmatpush1.bf16.msra.mxu0 0
    %223 = vmatprep.subr.bf16.mxu0 0
    %224 = vmatpush1.bf16.msra.mxu0 0
    %225 = vmatprep.subr.bf16.mxu0 0
    %226 = vmatpush1.bf16.msra.mxu0 0
    %227 = vmatprep.subr.bf16.mxu0 0
    %228 = vmatpush1.bf16.msra.mxu0 0
    %229 = vmatprep.subr.bf16.mxu0 0
    %230 = vmatpush1.bf16.msra.mxu0 0
    %231 = vmatprep.subr.bf16.mxu0 0
    %232 = vmatpush1.bf16.msra.mxu0 0
    %233 = vmatprep.subr.bf16.mxu0 0
    %234 = vmatpush1.bf16.msra.mxu0 0
    %235 = vmatprep.mubr.bf16.mxu0 0
    %236 = vmatmul.mubr.bf16.gmra.mrb[0].mxu0 %v201
    %v237 = vpop.f32.mrb[0].mxu0
    %v238 = vadd.f32 %v176, %v237
    %v239 = vpop.f32.mrb[0].mxu0
    %v240 = vpop.f32.mrb[0].mxu0
    %v241 = vadd.f32 %v176, %v240
    %v242 = vpop.f32.mrb[0].mxu0
    %243 = vdwg.mxu0
    %v244 = vpack.c.bf16 %v241, %v238
    %245 = vrot.lane.b32.xlu0 %v196, 96
    %v246 = vpop.permute.xlu0 %245
    %247 = vrot.lane.b32.xlu0 %v197, 96
    %v248 = vpop.permute.xlu0 %247
    %251 = vmatprep.subr.bf16.mxu0 0
    %252 = vmatpush1.bf16.msra.mxu0 %v246
    %253 = vmatprep.subr.bf16.mxu0 0
    %254 = vmatpush1.bf16.msra.mxu0 %v248
    %255 = vmatprep.subr.bf16.mxu0 0
    %256 = vmatpush1.bf16.msra.mxu0 0
    %257 = vmatprep.subr.bf16.mxu0 0
    %258 = vmatpush1.bf16.msra.mxu0 0
    %259 = vmatprep.subr.bf16.mxu0 0
    %260 = vmatpush1.bf16.msra.mxu0 0
    %261 = vmatprep.subr.bf16.mxu0 0
    %262 = vmatpush1.bf16.msra.mxu0 0
    %263 = vmatprep.subr.bf16.mxu0 0
    %264 = vmatpush1.bf16.msra.mxu0 0
    %265 = vmatprep.subr.bf16.mxu0 0
    %266 = vmatpush1.bf16.msra.mxu0 0
    %267 = vmatprep.subr.bf16.mxu0 0
    %268 = vmatpush1.bf16.msra.mxu0 0
    %269 = vmatprep.subr.bf16.mxu0 0
    %270 = vmatpush1.bf16.msra.mxu0 0
    %271 = vmatprep.subr.bf16.mxu0 0
    %272 = vmatpush1.bf16.msra.mxu0 0
    %273 = vmatprep.subr.bf16.mxu0 0
    %274 = vmatpush1.bf16.msra.mxu0 0
    %275 = vmatprep.subr.bf16.mxu0 0
    %276 = vmatpush1.bf16.msra.mxu0 0
    %277 = vmatprep.subr.bf16.mxu0 0
    %278 = vmatpush1.bf16.msra.mxu0 0
    %279 = vmatprep.subr.bf16.mxu0 0
    %280 = vmatpush1.bf16.msra.mxu0 0
    %281 = vmatprep.subr.bf16.mxu0 0
    %282 = vmatpush1.bf16.msra.mxu0 0
    %283 = vmatprep.mubr.bf16.mxu0 0
    %284 = vmatmul.mubr.bf16.gmra.mrb[0].mxu0 %v201
    %v285 = vpop.f32.mrb[0].mxu0
    %v286 = vadd.f32 %v177, %v285
    %v287 = vpop.f32.mrb[0].mxu0
    %v288 = vpop.f32.mrb[0].mxu0
    %v289 = vadd.f32 %v177, %v288
    %v290 = vpop.f32.mrb[0].mxu0
    %291 = vdwg.mxu0
    %v292 = vpack.c.bf16 %v289, %v286
    %v293 = vld [vmem:[%s2] sm:$0xff]
    %v294 = vld [vmem:[%s2 + $0x8] sm:$0xff]
    %v295 = vld [vmem:[%s2 + $0x10] sm:$0xff]
    %v296 = vld [vmem:[%s2 + $0x18] sm:$0xff]
    %v297 = vld [vmem:[%s2 + $0x20] sm:$0xff]
    %v298 = vld [vmem:[%s2 + $0x28] sm:$0xff]
    %v299 = vld [vmem:[%s2 + $0x30] sm:$0xff]
    %v300 = vld [vmem:[%s2 + $0x38] sm:$0xff]
    %v301 = vpack.c.bf16 %v294, %v293
    %v302 = vpack.c.bf16 %v296, %v295
    %v303 = vpack.c.bf16 %v298, %v297
    %v304 = vpack.c.bf16 %v300, %v299
    %v306 = vsel %vm158, %v301, 0
    %v309 = vsel %vm158, %v302, 0
    %v312 = vsel %vm158, %v303, 0
    %v315 = vsel %vm158, %v304, 0
    %317 = vmatprep.subr.bf16.mxu0 0
    %318 = vmatpush1.bf16.msra.mxu0 %v246
    %319 = vmatprep.subr.bf16.mxu0 0
    %320 = vmatpush1.bf16.msra.mxu0 %v248
    %321 = vmatprep.subr.bf16.mxu0 0
    %322 = vmatpush1.bf16.msra.mxu0 0
    %323 = vmatprep.subr.bf16.mxu0 0
    %324 = vmatpush1.bf16.msra.mxu0 0
    %325 = vmatprep.subr.bf16.mxu0 0
    %326 = vmatpush1.bf16.msra.mxu0 0
    %327 = vmatprep.subr.bf16.mxu0 0
    %328 = vmatpush1.bf16.msra.mxu0 0
    %329 = vmatprep.subr.bf16.mxu0 0
    %330 = vmatpush1.bf16.msra.mxu0 0
    %331 = vmatprep.subr.bf16.mxu0 0
    %332 = vmatpush1.bf16.msra.mxu0 0
    %333 = vmatprep.subr.bf16.mxu0 0
    %334 = vmatpush1.bf16.msra.mxu0 0
    %335 = vmatprep.subr.bf16.mxu0 0
    %336 = vmatpush1.bf16.msra.mxu0 0
    %337 = vmatprep.subr.bf16.mxu0 0
    %338 = vmatpush1.bf16.msra.mxu0 0
    %339 = vmatprep.subr.bf16.mxu0 0
    %340 = vmatpush1.bf16.msra.mxu0 0
    %341 = vmatprep.subr.bf16.mxu0 0
    %342 = vmatpush1.bf16.msra.mxu0 0
    %343 = vmatprep.subr.bf16.mxu0 0
    %344 = vmatpush1.bf16.msra.mxu0 0
    %345 = vmatprep.subr.bf16.mxu0 0
    %346 = vmatpush1.bf16.msra.mxu0 0
    %347 = vmatprep.subr.bf16.mxu0 0
    %348 = vmatpush1.bf16.msra.mxu0 0
    %349 = vmatprep.mubr.bf16.mxu0 0
    %350 = vmatmul.mubr.bf16.gmra.mrb[0].mxu0 %v306
    %v351 = vpop.f32.mrb[0].mxu0
    %v352 = vadd.f32 %v177, %v351
    %v353 = vpop.f32.mrb[0].mxu0
    %v354 = vpop.f32.mrb[0].mxu0
    %v355 = vadd.f32 %v177, %v354
    %v356 = vpop.f32.mrb[0].mxu0
    %357 = vmatprep.mubr.bf16.mxu0 0
    %358 = vmatmul.mubr.bf16.gmra.mrb[0].mxu0 %v309
    %v359 = vpop.f32.mrb[0].mxu0
    %v360 = vadd.f32 %v177, %v359
    %v361 = vpop.f32.mrb[0].mxu0
    %v362 = vpop.f32.mrb[0].mxu0
    %v363 = vadd.f32 %v177, %v362
    %v364 = vpop.f32.mrb[0].mxu0
    %365 = vmatprep.mubr.bf16.mxu0 0
    %366 = vmatmul.mubr.bf16.gmra.mrb[0].mxu0 %v312
    %v367 = vpop.f32.mrb[0].mxu0
    %v368 = vadd.f32 %v177, %v367
    %v369 = vpop.f32.mrb[0].mxu0
    %v370 = vpop.f32.mrb[0].mxu0
    %v371 = vadd.f32 %v177, %v370
    %v372 = vpop.f32.mrb[0].mxu0
    %373 = vmatprep.mubr.bf16.mxu0 0
    %374 = vmatmul.mubr.bf16.gmra.mrb[0].mxu0 %v315
    %v375 = vpop.f32.mrb[0].mxu0
    %v376 = vadd.f32 %v177, %v375
    %v377 = vpop.f32.mrb[0].mxu0
    %v378 = vpop.f32.mrb[0].mxu0
    %v379 = vadd.f32 %v177, %v378
    %v380 = vpop.f32.mrb[0].mxu0
    %381 = vdwg.mxu0
    %v382 = vpack.c.bf16 %v355, %v352
    %v383 = vpack.c.bf16 %v363, %v360
    %v384 = vpack.c.bf16 %v371, %v368
    %v385 = vpack.c.bf16 %v379, %v376
    %v386 = vstv %s27
    %vm387 = vcmp.lt.s32.totalorder %v31, %v386
    %vm388 = vcmask 130048
    %v390 = vsel %vm388, %v244, 0
    %v393 = vsel %vm388, %v382, 0
    %v396 = vsel %vm388, %v383, 0
    %v399 = vsel %vm388, %v384, 0
    %v402 = vsel %vm388, %v385, 0
    %404 = vmatprep.subr.bf16.mxu0 0
    %405 = vmatpush1.bf16.xpose.msra.mxu0 %v393
    %406 = vmatprep.subr.bf16.mxu0 0
    %407 = vmatpush1.bf16.xpose.msra.mxu0 %v396
    %408 = vmatprep.subr.bf16.mxu0 0
    %409 = vmatpush1.bf16.xpose.msra.mxu0 %v399
    %410 = vmatprep.subr.bf16.mxu0 0
    %411 = vmatpush1.bf16.xpose.msra.mxu0 %v402
    %412 = vmatprep.subr.bf16.mxu0 0
    %413 = vmatpush1.bf16.xpose.msra.mxu0 0
    %414 = vmatprep.subr.bf16.mxu0 0
    %415 = vmatpush1.bf16.xpose.msra.mxu0 0
    %416 = vmatprep.subr.bf16.mxu0 0
    %417 = vmatpush1.bf16.xpose.msra.mxu0 0
    %418 = vmatprep.subr.bf16.mxu0 0
    %419 = vmatpush1.bf16.xpose.msra.mxu0 0
    %420 = vmatprep.subr.bf16.mxu0 0
    %421 = vmatpush1.bf16.xpose.msra.mxu0 0
    %422 = vmatprep.subr.bf16.mxu0 0
    %423 = vmatpush1.bf16.xpose.msra.mxu0 0
    %424 = vmatprep.subr.bf16.mxu0 0
    %425 = vmatpush1.bf16.xpose.msra.mxu0 0
    %426 = vmatprep.subr.bf16.mxu0 0
    %427 = vmatpush1.bf16.xpose.msra.mxu0 0
    %428 = vmatprep.subr.bf16.mxu0 0
    %429 = vmatpush1.bf16.xpose.msra.mxu0 0
    %430 = vmatprep.subr.bf16.mxu0 0
    %431 = vmatpush1.bf16.xpose.msra.mxu0 0
    %432 = vmatprep.subr.bf16.mxu0 0
    %433 = vmatpush1.bf16.xpose.msra.mxu0 0
    %434 = vmatprep.subr.bf16.mxu0 0
    %435 = vmatpush1.bf16.xpose.msra.mxu0 0
    %436 = vmatprep.mubr.bf16.mxu0 0
    %437 = vmatmul.mubr.bf16.gmra.mrb[0].mxu0 %v390
    %v438 = vpop.f32.mrb[0].mxu0
    %v439 = vadd.f32 0.0, %v438
    %v440 = vpop.f32.mrb[0].mxu0
    %v441 = vpop.f32.mrb[0].mxu0
    %v442 = vpop.f32.mrb[0].mxu0
    %443 = vdwg.mxu0
    %v444 = vmul.f32 %v439, 0.25
    %v445 = vsel %vm387, 1, 0
    %vm446 = vcmp.eq.s32.totalorder %v445, 1
    %v447 = vsel %vm446, %v444, -1e+30
    %v449 = vsel %vm388, %v292, 0
    %451 = vmatprep.subr.bf16.mxu0 0
    %452 = vmatpush1.bf16.xpose.msra.mxu0 %v449
    %453 = vmatprep.subr.bf16.mxu0 0
    %454 = vmatpush1.bf16.xpose.msra.mxu0 0
    %455 = vmatprep.subr.bf16.mxu0 0
    %456 = vmatpush1.bf16.xpose.msra.mxu0 0
    %457 = vmatprep.subr.bf16.mxu0 0
    %458 = vmatpush1.bf16.xpose.msra.mxu0 0
    %459 = vmatprep.subr.bf16.mxu0 0
    %460 = vmatpush1.bf16.xpose.msra.mxu0 0
    %461 = vmatprep.subr.bf16.mxu0 0
    %462 = vmatpush1.bf16.xpose.msra.mxu0 0
    %463 = vmatprep.subr.bf16.mxu0 0
    %464 = vmatpush1.bf16.xpose.msra.mxu0 0
    %465 = vmatprep.subr.bf16.mxu0 0
    %466 = vmatpush1.bf16.xpose.msra.mxu0 0
    %467 = vmatprep.subr.bf16.mxu0 0
    %468 = vmatpush1.bf16.xpose.msra.mxu0 0
    %469 = vmatprep.subr.bf16.mxu0 0
    %470 = vmatpush1.bf16.xpose.msra.mxu0 0
    %471 = vmatprep.subr.bf16.mxu0 0
    %472 = vmatpush1.bf16.xpose.msra.mxu0 0
    %473 = vmatprep.subr.bf16.mxu0 0
    %474 = vmatpush1.bf16.xpose.msra.mxu0 0
    %475 = vmatprep.subr.bf16.mxu0 0
    %476 = vmatpush1.bf16.xpose.msra.mxu0 0
    %477 = vmatprep.subr.bf16.mxu0 0
    %478 = vmatpush1.bf16.xpose.msra.mxu0 0
    %479 = vmatprep.subr.bf16.mxu0 0
    %480 = vmatpush1.bf16.xpose.msra.mxu0 0
    %481 = vmatprep.subr.bf16.mxu0 0
    %482 = vmatpush1.bf16.xpose.msra.mxu0 0
    %483 = vmatprep.mubr.bf16.mxu0 0
    %484 = vmatmul.mubr.bf16.gmra.mrb[0].mxu0 %v390
    %v485 = vpop.f32.mrb[0].mxu0
    %v486 = vadd.f32 0.0, %v485
    %v487 = vpop.f32.mrb[0].mxu0
    %v488 = vpop.f32.mrb[0].mxu0
    %v489 = vpop.f32.mrb[0].mxu0
    %490 = vdwg.mxu0
    %v491 = vmul.f32 %v486, 0.25
    %vm492 = vcmask 523264
    %v493 = vsel %vm492, %v447, -inf
    %494 = vmax.xlane.f32.xlu0 %v493
    %v495 = vpop.xlane.xlu0 %494
    %vm496 = vcmask 64512
    %v497 = vsel %vm496, %v491, -inf
    %498 = vmax.xlane.f32.xlu0 %v497
    %v499 = vpop.xlane.xlu0 %498
    %v500 = vmax.f32 %v495, %v499
    %v501 = vsub.f32 %v447, %v500
    %v502 = vmul.f32 %v501, 1.442695
    %v503 = vpow.pop %v502
    %v504 = vsub.f32 %v491, %v500
    %v505 = vmul.f32 %v504, 1.442695
    %v506 = vpow.pop %v505
    %v507 = vsel %vm492, %v503, 0.0
    %508 = vadd.xlane.f32.xlu0 %v507
    %v509 = vpop.xlane.xlu0 %508
    %v510 = vsel %vm496, %v506, 0.0
    %511 = vadd.xlane.f32.xlu0 %v510
    %v512 = vpop.xlane.xlu0 %511
    %v513 = vadd.f32 %v509, %v512
    %v514 = vrcp.pop %v513
    %v515 = vmul.f32 1.0, %v514
    %v516 = vpack.c.bf16 %v503, %v503
    %v517 = vpack.c.bf16 %v506, %v506
    %519 = vrot.lane.b32.xlu0 %v292, 96
    %v520 = vpop.permute.xlu0 %519
    %v522 = vsel %vm496, %v517, 0
    %vm524 = vcmask 1043456
    %v526 = vsel %vm524, %v520, 0
    %528 = vmatprep.subr.bf16.mxu0 0
    %529 = vmatpush1.bf16.msra.mxu0 %v526
    %530 = vmatprep.subr.bf16.mxu0 0
    %531 = vmatpush1.bf16.msra.mxu0 0
    %532 = vmatprep.subr.bf16.mxu0 0
    %533 = vmatpush1.bf16.msra.mxu0 0
    %534 = vmatprep.subr.bf16.mxu0 0
    %535 = vmatpush1.bf16.msra.mxu0 0
    %536 = vmatprep.subr.bf16.mxu0 0
    %537 = vmatpush1.bf16.msra.mxu0 0
    %538 = vmatprep.subr.bf16.mxu0 0
    %539 = vmatpush1.bf16.msra.mxu0 0
    %540 = vmatprep.subr.bf16.mxu0 0
    %541 = vmatpush1.bf16.msra.mxu0 0
    %542 = vmatprep.subr.bf16.mxu0 0
    %543 = vmatpush1.bf16.msra.mxu0 0
    %544 = vmatprep.subr.bf16.mxu0 0
    %545 = vmatpush1.bf16.msra.mxu0 0
    %546 = vmatprep.subr.bf16.mxu0 0
    %547 = vmatpush1.bf16.msra.mxu0 0
    %548 = vmatprep.subr.bf16.mxu0 0
    %549 = vmatpush1.bf16.msra.mxu0 0
    %550 = vmatprep.subr.bf16.mxu0 0
    %551 = vmatpush1.bf16.msra.mxu0 0
    %552 = vmatprep.subr.bf16.mxu0 0
    %553 = vmatpush1.bf16.msra.mxu0 0
    %554 = vmatprep.subr.bf16.mxu0 0
    %555 = vmatpush1.bf16.msra.mxu0 0
    %556 = vmatprep.subr.bf16.mxu0 0
    %557 = vmatpush1.bf16.msra.mxu0 0
    %558 = vmatprep.subr.bf16.mxu0 0
    %559 = vmatpush1.bf16.msra.mxu0 0
    %560 = vmatprep.mubr.bf16.mxu0 0
    %561 = vmatmul.mubr.bf16.gmra.mrb[0].mxu0 %v522
    %v562 = vpop.f32.mrb[0].mxu0
    %v563 = vadd.f32 0.0, %v562
    %v564 = vpop.f32.mrb[0].mxu0
    %v565 = vpop.f32.mrb[0].mxu0
    %v566 = vpop.f32.mrb[0].mxu0
    %567 = vdwg.mxu0
    %572 = vrot.lane.b32.xlu0 %v382, 96
    %v573 = vpop.permute.xlu0 %572
    %574 = vrot.lane.b32.xlu0 %v383, 96
    %v575 = vpop.permute.xlu0 %574
    %576 = vrot.lane.b32.xlu0 %v384, 96
    %v577 = vpop.permute.xlu0 %576
    %578 = vrot.lane.b32.xlu0 %v385, 96
    %v579 = vpop.permute.xlu0 %578
    %v585 = vsel %vm492, %v516, 0
    %587 = vmatprep.subr.bf16.mxu0 0
    %588 = vmatpush1.bf16.msra.mxu0 %v573
    %589 = vmatprep.subr.bf16.mxu0 0
    %590 = vmatpush1.bf16.msra.mxu0 %v575
    %591 = vmatprep.subr.bf16.mxu0 0
    %592 = vmatpush1.bf16.msra.mxu0 %v577
    %593 = vmatprep.subr.bf16.mxu0 0
    %594 = vmatpush1.bf16.msra.mxu0 %v579
    %595 = vmatprep.subr.bf16.mxu0 0
    %596 = vmatpush1.bf16.msra.mxu0 0
    %597 = vmatprep.subr.bf16.mxu0 0
    %598 = vmatpush1.bf16.msra.mxu0 0
    %599 = vmatprep.subr.bf16.mxu0 0
    %600 = vmatpush1.bf16.msra.mxu0 0
    %601 = vmatprep.subr.bf16.mxu0 0
    %602 = vmatpush1.bf16.msra.mxu0 0
    %603 = vmatprep.subr.bf16.mxu0 0
    %604 = vmatpush1.bf16.msra.mxu0 0
    %605 = vmatprep.subr.bf16.mxu0 0
    %606 = vmatpush1.bf16.msra.mxu0 0
    %607 = vmatprep.subr.bf16.mxu0 0
    %608 = vmatpush1.bf16.msra.mxu0 0
    %609 = vmatprep.subr.bf16.mxu0 0
    %610 = vmatpush1.bf16.msra.mxu0 0
    %611 = vmatprep.subr.bf16.mxu0 0
    %612 = vmatpush1.bf16.msra.mxu0 0
    %613 = vmatprep.subr.bf16.mxu0 0
    %614 = vmatpush1.bf16.msra.mxu0 0
    %615 = vmatprep.subr.bf16.mxu0 0
    %616 = vmatpush1.bf16.msra.mxu0 0
    %617 = vmatprep.subr.bf16.mxu0 0
    %618 = vmatpush1.bf16.msra.mxu0 0
    %619 = vmatprep.mubr.bf16.mxu0 0
    %620 = vmatmul.mubr.bf16.gmra.mrb[0].mxu0 %v585
    %v621 = vpop.f32.mrb[0].mxu0
    %v622 = vadd.f32 %v563, %v621
    %v623 = vpop.f32.mrb[0].mxu0
    %v624 = vpop.f32.mrb[0].mxu0
    %v625 = vpop.f32.mrb[0].mxu0
    %626 = vdwg.mxu0
    %v627 = vmul.f32 %v622, %v515
    %v628 = vmul.f32 %v503, %v501
    %v629 = vsel %vm492, %v628, 0.0
    %630 = vadd.xlane.f32.xlu0 %v629
    %v631 = vpop.xlane.xlu0 %630
    %v632 = vmul.f32 %v506, %v504
    %v633 = vsel %vm496, %v632, 0.0
    %634 = vadd.xlane.f32.xlu0 %v633
    %v635 = vpop.xlane.xlu0 %634
    %v636 = vadd.f32 %v631, %v635
    %v637 = vlog2.pop %v513
    %v638 = vmul.f32 %v637, 0.6931472
    %v639 = vmul.f32 %v636, %v515
    %v640 = vsub.f32 %v638, %v639
    %642 = vrot.lane.b32.xlu0 %v244, 112
    %v643 = vpop.permute.xlu0 %642
    %644 = vrot.lane.b32.xlu0 %v382, 112
    %v645 = vpop.permute.xlu0 %644
    %646 = vrot.lane.b32.xlu0 %v383, 112
    %v647 = vpop.permute.xlu0 %646
    %648 = vrot.lane.b32.xlu0 %v384, 112
    %v649 = vpop.permute.xlu0 %648
    %650 = vrot.lane.b32.xlu0 %v385, 112
    %v651 = vpop.permute.xlu0 %650
    %v653 = vsel %vm388, %v643, 0
    %v656 = vsel %vm388, %v645, 0
    %v659 = vsel %vm388, %v647, 0
    %v662 = vsel %vm388, %v649, 0
    %v665 = vsel %vm388, %v651, 0
    %667 = vmatprep.subr.bf16.mxu0 0
    %668 = vmatpush1.bf16.xpose.msra.mxu0 %v656
    %669 = vmatprep.subr.bf16.mxu0 0
    %670 = vmatpush1.bf16.xpose.msra.mxu0 %v659
    %671 = vmatprep.subr.bf16.mxu0 0
    %672 = vmatpush1.bf16.xpose.msra.mxu0 %v662
    %673 = vmatprep.subr.bf16.mxu0 0
    %674 = vmatpush1.bf16.xpose.msra.mxu0 %v665
    %675 = vmatprep.subr.bf16.mxu0 0
    %676 = vmatpush1.bf16.xpose.msra.mxu0 0
    %677 = vmatprep.subr.bf16.mxu0 0
    %678 = vmatpush1.bf16.xpose.msra.mxu0 0
    %679 = vmatprep.subr.bf16.mxu0 0
    %680 = vmatpush1.bf16.xpose.msra.mxu0 0
    %681 = vmatprep.subr.bf16.mxu0 0
    %682 = vmatpush1.bf16.xpose.msra.mxu0 0
    %683 = vmatprep.subr.bf16.mxu0 0
    %684 = vmatpush1.bf16.xpose.msra.mxu0 0
    %685 = vmatprep.subr.bf16.mxu0 0
    %686 = vmatpush1.bf16.xpose.msra.mxu0 0
    %687 = vmatprep.subr.bf16.mxu0 0
    %688 = vmatpush1.bf16.xpose.msra.mxu0 0
    %689 = vmatprep.subr.bf16.mxu0 0
    %690 = vmatpush1.bf16.xpose.msra.mxu0 0
    %691 = vmatprep.subr.bf16.mxu0 0
    %692 = vmatpush1.bf16.xpose.msra.mxu0 0
    %693 = vmatprep.subr.bf16.mxu0 0
    %694 = vmatpush1.bf16.xpose.msra.mxu0 0
    %695 = vmatprep.subr.bf16.mxu0 0
    %696 = vmatpush1.bf16.xpose.msra.mxu0 0
    %697 = vmatprep.subr.bf16.mxu0 0
    %698 = vmatpush1.bf16.xpose.msra.mxu0 0
    %699 = vmatprep.mubr.bf16.mxu0 0
    %700 = vmatmul.mubr.bf16.gmra.mrb[0].mxu0 %v653
    %v701 = vpop.f32.mrb[0].mxu0
    %v702 = vadd.f32 0.0, %v701
    %v703 = vpop.f32.mrb[0].mxu0
    %v704 = vpop.f32.mrb[0].mxu0
    %v705 = vpop.f32.mrb[0].mxu0
    %706 = vdwg.mxu0
    %v707 = vmul.f32 %v702, 0.25
    %v708 = vsel %vm446, %v707, -1e+30
    %709 = vrot.lane.b32.xlu0 %v292, 112
    %v710 = vpop.permute.xlu0 %709
    %v712 = vsel %vm388, %v710, 0
    %714 = vmatprep.subr.bf16.mxu0 0
    %715 = vmatpush1.bf16.xpose.msra.mxu0 %v712
    %716 = vmatprep.subr.bf16.mxu0 0
    %717 = vmatpush1.bf16.xpose.msra.mxu0 0
    %718 = vmatprep.subr.bf16.mxu0 0
    %719 = vmatpush1.bf16.xpose.msra.mxu0 0
    %720 = vmatprep.subr.bf16.mxu0 0
    %721 = vmatpush1.bf16.xpose.msra.mxu0 0
    %722 = vmatprep.subr.bf16.mxu0 0
    %723 = vmatpush1.bf16.xpose.msra.mxu0 0
    %724 = vmatprep.subr.bf16.mxu0 0
    %725 = vmatpush1.bf16.xpose.msra.mxu0 0
    %726 = vmatprep.subr.bf16.mxu0 0
    %727 = vmatpush1.bf16.xpose.msra.mxu0 0
    %728 = vmatprep.subr.bf16.mxu0 0
    %729 = vmatpush1.bf16.xpose.msra.mxu0 0
    %730 = vmatprep.subr.bf16.mxu0 0
    %731 = vmatpush1.bf16.xpose.msra.mxu0 0
    %732 = vmatprep.subr.bf16.mxu0 0
    %733 = vmatpush1.bf16.xpose.msra.mxu0 0
    %734 = vmatprep.subr.bf16.mxu0 0
    %735 = vmatpush1.bf16.xpose.msra.mxu0 0
    %736 = vmatprep.subr.bf16.mxu0 0
    %737 = vmatpush1.bf16.xpose.msra.mxu0 0
    %738 = vmatprep.subr.bf16.mxu0 0
    %739 = vmatpush1.bf16.xpose.msra.mxu0 0
    %740 = vmatprep.subr.bf16.mxu0 0
    %741 = vmatpush1.bf16.xpose.msra.mxu0 0
    %742 = vmatprep.subr.bf16.mxu0 0
    %743 = vmatpush1.bf16.xpose.msra.mxu0 0
    %744 = vmatprep.subr.bf16.mxu0 0
    %745 = vmatpush1.bf16.xpose.msra.mxu0 0
    %746 = vmatprep.mubr.bf16.mxu0 0
    %747 = vmatmul.mubr.bf16.gmra.mrb[0].mxu0 %v653
    %v748 = vpop.f32.mrb[0].mxu0
    %v749 = vadd.f32 0.0, %v748
    %v750 = vpop.f32.mrb[0].mxu0
    %v751 = vpop.f32.mrb[0].mxu0
    %v752 = vpop.f32.mrb[0].mxu0
    %753 = vdwg.mxu0
    %v754 = vmul.f32 %v749, 0.25
    %v755 = vsel %vm492, %v708, -inf
    %756 = vmax.xlane.f32.xlu0 %v755
    %v757 = vpop.xlane.xlu0 %756
    %v758 = vsel %vm496, %v754, -inf
    %759 = vmax.xlane.f32.xlu0 %v758
    %v760 = vpop.xlane.xlu0 %759
    %v761 = vmax.f32 %v757, %v760
    %v762 = vsub.f32 %v708, %v761
    %v763 = vmul.f32 %v762, 1.442695
    %v764 = vpow.pop %v763
    %v765 = vsub.f32 %v754, %v761
    %v766 = vmul.f32 %v765, 1.442695
    %v767 = vpow.pop %v766
    %v768 = vsel %vm492, %v764, 0.0
    %769 = vadd.xlane.f32.xlu0 %v768
    %v770 = vpop.xlane.xlu0 %769
    %v771 = vsel %vm496, %v767, 0.0
    %772 = vadd.xlane.f32.xlu0 %v771
    %v773 = vpop.xlane.xlu0 %772
    %v774 = vadd.f32 %v770, %v773
    %v775 = vrcp.pop %v774
    %v776 = vmul.f32 1.0, %v775
    %v777 = vpack.c.bf16 %v764, %v764
    %v778 = vpack.c.bf16 %v767, %v767
    %779 = vrot.lane.b32.xlu0 %v292, 80
    %v780 = vpop.permute.xlu0 %779
    %v782 = vsel %vm496, %v778, 0
    %v785 = vsel %vm524, %v780, 0
    %787 = vmatprep.subr.bf16.mxu0 0
    %788 = vmatpush1.bf16.msra.mxu0 %v785
    %789 = vmatprep.subr.bf16.mxu0 0
    %790 = vmatpush1.bf16.msra.mxu0 0
    %791 = vmatprep.subr.bf16.mxu0 0
    %792 = vmatpush1.bf16.msra.mxu0 0
    %793 = vmatprep.subr.bf16.mxu0 0
    %794 = vmatpush1.bf16.msra.mxu0 0
    %795 = vmatprep.subr.bf16.mxu0 0
    %796 = vmatpush1.bf16.msra.mxu0 0
    %797 = vmatprep.subr.bf16.mxu0 0
    %798 = vmatpush1.bf16.msra.mxu0 0
    %799 = vmatprep.subr.bf16.mxu0 0
    %800 = vmatpush1.bf16.msra.mxu0 0
    %801 = vmatprep.subr.bf16.mxu0 0
    %802 = vmatpush1.bf16.msra.mxu0 0
    %803 = vmatprep.subr.bf16.mxu0 0
    %804 = vmatpush1.bf16.msra.mxu0 0
    %805 = vmatprep.subr.bf16.mxu0 0
    %806 = vmatpush1.bf16.msra.mxu0 0
    %807 = vmatprep.subr.bf16.mxu0 0
    %808 = vmatpush1.bf16.msra.mxu0 0
    %809 = vmatprep.subr.bf16.mxu0 0
    %810 = vmatpush1.bf16.msra.mxu0 0
    %811 = vmatprep.subr.bf16.mxu0 0
    %812 = vmatpush1.bf16.msra.mxu0 0
    %813 = vmatprep.subr.bf16.mxu0 0
    %814 = vmatpush1.bf16.msra.mxu0 0
    %815 = vmatprep.subr.bf16.mxu0 0
    %816 = vmatpush1.bf16.msra.mxu0 0
    %817 = vmatprep.subr.bf16.mxu0 0
    %818 = vmatpush1.bf16.msra.mxu0 0
    %819 = vmatprep.mubr.bf16.mxu0 0
    %820 = vmatmul.mubr.bf16.gmra.mrb[0].mxu0 %v782
    %v821 = vpop.f32.mrb[0].mxu0
    %v822 = vadd.f32 0.0, %v821
    %v823 = vpop.f32.mrb[0].mxu0
    %v824 = vpop.f32.mrb[0].mxu0
    %v825 = vpop.f32.mrb[0].mxu0
    %826 = vdwg.mxu0
    %827 = vrot.lane.b32.xlu0 %v382, 80
    %v828 = vpop.permute.xlu0 %827
    %829 = vrot.lane.b32.xlu0 %v383, 80
    %v830 = vpop.permute.xlu0 %829
    %831 = vrot.lane.b32.xlu0 %v384, 80
    %v832 = vpop.permute.xlu0 %831
    %833 = vrot.lane.b32.xlu0 %v385, 80
    %v834 = vpop.permute.xlu0 %833
    %v840 = vsel %vm492, %v777, 0
    %842 = vmatprep.subr.bf16.mxu0 0
    %843 = vmatpush1.bf16.msra.mxu0 %v828
    %844 = vmatprep.subr.bf16.mxu0 0
    %845 = vmatpush1.bf16.msra.mxu0 %v830
    %846 = vmatprep.subr.bf16.mxu0 0
    %847 = vmatpush1.bf16.msra.mxu0 %v832
    %848 = vmatprep.subr.bf16.mxu0 0
    %849 = vmatpush1.bf16.msra.mxu0 %v834
    %850 = vmatprep.subr.bf16.mxu0 0
    %851 = vmatpush1.bf16.msra.mxu0 0
    %852 = vmatprep.subr.bf16.mxu0 0
    %853 = vmatpush1.bf16.msra.mxu0 0
    %854 = vmatprep.subr.bf16.mxu0 0
    %855 = vmatpush1.bf16.msra.mxu0 0
    %856 = vmatprep.subr.bf16.mxu0 0
    %857 = vmatpush1.bf16.msra.mxu0 0
    %858 = vmatprep.subr.bf16.mxu0 0
    %859 = vmatpush1.bf16.msra.mxu0 0
    %860 = vmatprep.subr.bf16.mxu0 0
    %861 = vmatpush1.bf16.msra.mxu0 0
    %862 = vmatprep.subr.bf16.mxu0 0
    %863 = vmatpush1.bf16.msra.mxu0 0
    %864 = vmatprep.subr.bf16.mxu0 0
    %865 = vmatpush1.bf16.msra.mxu0 0
    %866 = vmatprep.subr.bf16.mxu0 0
    %867 = vmatpush1.bf16.msra.mxu0 0
    %868 = vmatprep.subr.bf16.mxu0 0
    %869 = vmatpush1.bf16.msra.mxu0 0
    %870 = vmatprep.subr.bf16.mxu0 0
    %871 = vmatpush1.bf16.msra.mxu0 0
    %872 = vmatprep.subr.bf16.mxu0 0
    %873 = vmatpush1.bf16.msra.mxu0 0
    %874 = vmatprep.mubr.bf16.mxu0 0
    %875 = vmatmul.mubr.bf16.gmra.mrb[0].mxu0 %v840
    %v876 = vpop.f32.mrb[0].mxu0
    %v877 = vadd.f32 %v822, %v876
    %v878 = vpop.f32.mrb[0].mxu0
    %v879 = vpop.f32.mrb[0].mxu0
    %v880 = vpop.f32.mrb[0].mxu0
    %881 = vdwg.mxu0
    %v882 = vmul.f32 %v877, %v776
    %v883 = vmul.f32 %v764, %v762
    %v884 = vsel %vm492, %v883, 0.0
    %885 = vadd.xlane.f32.xlu0 %v884
    %v886 = vpop.xlane.xlu0 %885
    %v887 = vmul.f32 %v767, %v765
    %v888 = vsel %vm496, %v887, 0.0
    %889 = vadd.xlane.f32.xlu0 %v888
    %v890 = vpop.xlane.xlu0 %889
    %v891 = vadd.f32 %v886, %v890
    %v892 = vlog2.pop %v774
    %v893 = vmul.f32 %v892, 0.6931472
    %v894 = vmul.f32 %v891, %v776
    %v895 = vsub.f32 %v893, %v894
    %897 = vrot.lane.b32.xlu0 %v882, 16
    %v898 = vpop.permute.xlu0 %897
    %v900 = vsel %vm388, %v627, %v898
    %v901 = vmax.f32 %v640, %v895
    %v902 = vrot.slane %v244, 4
    %v904 = vsel %vm388, %v902, 0
    %906 = vmatprep.subr.bf16.mxu0 0
    %907 = vmatpush1.bf16.xpose.msra.mxu0 %v393
    %908 = vmatprep.subr.bf16.mxu0 0
    %909 = vmatpush1.bf16.xpose.msra.mxu0 %v396
    %910 = vmatprep.subr.bf16.mxu0 0
    %911 = vmatpush1.bf16.xpose.msra.mxu0 %v399
    %912 = vmatprep.subr.bf16.mxu0 0
    %913 = vmatpush1.bf16.xpose.msra.mxu0 %v402
    %914 = vmatprep.subr.bf16.mxu0 0
    %915 = vmatpush1.bf16.xpose.msra.mxu0 0
    %916 = vmatprep.subr.bf16.mxu0 0
    %917 = vmatpush1.bf16.xpose.msra.mxu0 0
    %918 = vmatprep.subr.bf16.mxu0 0
    %919 = vmatpush1.bf16.xpose.msra.mxu0 0
    %920 = vmatprep.subr.bf16.mxu0 0
    %921 = vmatpush1.bf16.xpose.msra.mxu0 0
    %922 = vmatprep.subr.bf16.mxu0 0
    %923 = vmatpush1.bf16.xpose.msra.mxu0 0
    %924 = vmatprep.subr.bf16.mxu0 0
    %925 = vmatpush1.bf16.xpose.msra.mxu0 0
    %926 = vmatprep.subr.bf16.mxu0 0
    %927 = vmatpush1.bf16.xpose.msra.mxu0 0
    %928 = vmatprep.subr.bf16.mxu0 0
    %929 = vmatpush1.bf16.xpose.msra.mxu0 0
    %930 = vmatprep.subr.bf16.mxu0 0
    %931 = vmatpush1.bf16.xpose.msra.mxu0 0
    %932 = vmatprep.subr.bf16.mxu0 0
    %933 = vmatpush1.bf16.xpose.msra.mxu0 0
    %934 = vmatprep.subr.bf16.mxu0 0
    %935 = vmatpush1.bf16.xpose.msra.mxu0 0
    %936 = vmatprep.subr.bf16.mxu0 0
    %937 = vmatpush1.bf16.xpose.msra.mxu0 0
    %938 = vmatprep.mubr.bf16.mxu0 0
    %939 = vmatmul.mubr.bf16.gmra.mrb[0].mxu0 %v904
    %v940 = vpop.f32.mrb[0].mxu0
    %v941 = vadd.f32 0.0, %v940
    %v942 = vpop.f32.mrb[0].mxu0
    %v943 = vpop.f32.mrb[0].mxu0
    %v944 = vpop.f32.mrb[0].mxu0
    %945 = vdwg.mxu0
    %v946 = vmul.f32 %v941, 0.25
    %v947 = vsel %vm446, %v946, -1e+30
    %v948 = vrot.slane %v292, 4
    %v950 = vsel %vm388, %v948, 0
    %952 = vmatprep.subr.bf16.mxu0 0
    %953 = vmatpush1.bf16.xpose.msra.mxu0 %v950
    %954 = vmatprep.subr.bf16.mxu0 0
    %955 = vmatpush1.bf16.xpose.msra.mxu0 0
    %956 = vmatprep.subr.bf16.mxu0 0
    %957 = vmatpush1.bf16.xpose.msra.mxu0 0
    %958 = vmatprep.subr.bf16.mxu0 0
    %959 = vmatpush1.bf16.xpose.msra.mxu0 0
    %960 = vmatprep.subr.bf16.mxu0 0
    %961 = vmatpush1.bf16.xpose.msra.mxu0 0
    %962 = vmatprep.subr.bf16.mxu0 0
    %963 = vmatpush1.bf16.xpose.msra.mxu0 0
    %964 = vmatprep.subr.bf16.mxu0 0
    %965 = vmatpush1.bf16.xpose.msra.mxu0 0
    %966 = vmatprep.subr.bf16.mxu0 0
    %967 = vmatpush1.bf16.xpose.msra.mxu0 0
    %968 = vmatprep.subr.bf16.mxu0 0
    %969 = vmatpush1.bf16.xpose.msra.mxu0 0
    %970 = vmatprep.subr.bf16.mxu0 0
    %971 = vmatpush1.bf16.xpose.msra.mxu0 0
    %972 = vmatprep.subr.bf16.mxu0 0
    %973 = vmatpush1.bf16.xpose.msra.mxu0 0
    %974 = vmatprep.subr.bf16.mxu0 0
    %975 = vmatpush1.bf16.xpose.msra.mxu0 0
    %976 = vmatprep.subr.bf16.mxu0 0
    %977 = vmatpush1.bf16.xpose.msra.mxu0 0
    %978 = vmatprep.subr.bf16.mxu0 0
    %979 = vmatpush1.bf16.xpose.msra.mxu0 0
    %980 = vmatprep.subr.bf16.mxu0 0
    %981 = vmatpush1.bf16.xpose.msra.mxu0 0
    %982 = vmatprep.subr.bf16.mxu0 0
    %983 = vmatpush1.bf16.xpose.msra.mxu0 0
    %984 = vmatprep.mubr.bf16.mxu0 0
    %985 = vmatmul.mubr.bf16.gmra.mrb[0].mxu0 %v904
    %v986 = vpop.f32.mrb[0].mxu0
    %v987 = vadd.f32 0.0, %v986
    %v988 = vpop.f32.mrb[0].mxu0
    %v989 = vpop.f32.mrb[0].mxu0
    %v990 = vpop.f32.mrb[0].mxu0
    %991 = vdwg.mxu0
    %v992 = vmul.f32 %v987, 0.25
    %v993 = vsel %vm492, %v947, -inf
    %994 = vmax.xlane.f32.xlu0 %v993
    %v995 = vpop.xlane.xlu0 %994
    %v996 = vsel %vm496, %v992, -inf
    %997 = vmax.xlane.f32.xlu0 %v996
    %v998 = vpop.xlane.xlu0 %997
    %v999 = vmax.f32 %v995, %v998
    %v1000 = vsub.f32 %v947, %v999
    %v1001 = vmul.f32 %v1000, 1.442695
    %v1002 = vpow.pop %v1001
    %v1003 = vsub.f32 %v992, %v999
    %v1004 = vmul.f32 %v1003, 1.442695
    %v1005 = vpow.pop %v1004
    %v1006 = vsel %vm492, %v1002, 0.0
    %1007 = vadd.xlane.f32.xlu0 %v1006
    %v1008 = vpop.xlane.xlu0 %1007
    %v1009 = vsel %vm496, %v1005, 0.0
    %1010 = vadd.xlane.f32.xlu0 %v1009
    %v1011 = vpop.xlane.xlu0 %1010
    %v1012 = vadd.f32 %v1008, %v1011
    %v1013 = vrcp.pop %v1012
    %v1014 = vmul.f32 1.0, %v1013
    %v1015 = vpack.c.bf16 %v1002, %v1002
    %v1016 = vpack.c.bf16 %v1005, %v1005
    %1017 = vrot.lane.b32.xlu0 %v948, 96
    %v1018 = vpop.permute.xlu0 %1017
    %v1020 = vsel %vm496, %v1016, 0
    %v1023 = vsel %vm524, %v1018, 0
    %1025 = vmatprep.subr.bf16.mxu0 0
    %1026 = vmatpush1.bf16.msra.mxu0 %v1023
    %1027 = vmatprep.subr.bf16.mxu0 0
    %1028 = vmatpush1.bf16.msra.mxu0 0
    %1029 = vmatprep.subr.bf16.mxu0 0
    %1030 = vmatpush1.bf16.msra.mxu0 0
    %1031 = vmatprep.subr.bf16.mxu0 0
    %1032 = vmatpush1.bf16.msra.mxu0 0
    %1033 = vmatprep.subr.bf16.mxu0 0
    %1034 = vmatpush1.bf16.msra.mxu0 0
    %1035 = vmatprep.subr.bf16.mxu0 0
    %1036 = vmatpush1.bf16.msra.mxu0 0
    %1037 = vmatprep.subr.bf16.mxu0 0
    %1038 = vmatpush1.bf16.msra.mxu0 0
    %1039 = vmatprep.subr.bf16.mxu0 0
    %1040 = vmatpush1.bf16.msra.mxu0 0
    %1041 = vmatprep.subr.bf16.mxu0 0
    %1042 = vmatpush1.bf16.msra.mxu0 0
    %1043 = vmatprep.subr.bf16.mxu0 0
    %1044 = vmatpush1.bf16.msra.mxu0 0
    %1045 = vmatprep.subr.bf16.mxu0 0
    %1046 = vmatpush1.bf16.msra.mxu0 0
    %1047 = vmatprep.subr.bf16.mxu0 0
    %1048 = vmatpush1.bf16.msra.mxu0 0
    %1049 = vmatprep.subr.bf16.mxu0 0
    %1050 = vmatpush1.bf16.msra.mxu0 0
    %1051 = vmatprep.subr.bf16.mxu0 0
    %1052 = vmatpush1.bf16.msra.mxu0 0
    %1053 = vmatprep.subr.bf16.mxu0 0
    %1054 = vmatpush1.bf16.msra.mxu0 0
    %1055 = vmatprep.subr.bf16.mxu0 0
    %1056 = vmatpush1.bf16.msra.mxu0 0
    %1057 = vmatprep.mubr.bf16.mxu0 0
    %1058 = vmatmul.mubr.bf16.gmra.mrb[0].mxu0 %v1020
    %v1059 = vpop.f32.mrb[0].mxu0
    %v1060 = vadd.f32 0.0, %v1059
    %v1061 = vpop.f32.mrb[0].mxu0
    %v1062 = vpop.f32.mrb[0].mxu0
    %v1063 = vpop.f32.mrb[0].mxu0
    %1064 = vdwg.mxu0
    %v1066 = vsel %vm492, %v1015, 0
    %1068 = vmatprep.subr.bf16.mxu0 0
    %1069 = vmatpush1.bf16.msra.mxu0 %v573
    %1070 = vmatprep.subr.bf16.mxu0 0
    %1071 = vmatpush1.bf16.msra.mxu0 %v575
    %1072 = vmatprep.subr.bf16.mxu0 0
    %1073 = vmatpush1.bf16.msra.mxu0 %v577
    %1074 = vmatprep.subr.bf16.mxu0 0
    %1075 = vmatpush1.bf16.msra.mxu0 %v579
    %1076 = vmatprep.subr.bf16.mxu0 0
    %1077 = vmatpush1.bf16.msra.mxu0 0
    %1078 = vmatprep.subr.bf16.mxu0 0
    %1079 = vmatpush1.bf16.msra.mxu0 0
    %1080 = vmatprep.subr.bf16.mxu0 0
    %1081 = vmatpush1.bf16.msra.mxu0 0
    %1082 = vmatprep.subr.bf16.mxu0 0
    %1083 = vmatpush1.bf16.msra.mxu0 0
    %1084 = vmatprep.subr.bf16.mxu0 0
    %1085 = vmatpush1.bf16.msra.mxu0 0
    %1086 = vmatprep.subr.bf16.mxu0 0
    %1087 = vmatpush1.bf16.msra.mxu0 0
    %1088 = vmatprep.subr.bf16.mxu0 0
    %1089 = vmatpush1.bf16.msra.mxu0 0
    %1090 = vmatprep.subr.bf16.mxu0 0
    %1091 = vmatpush1.bf16.msra.mxu0 0
    %1092 = vmatprep.subr.bf16.mxu0 0
    %1093 = vmatpush1.bf16.msra.mxu0 0
    %1094 = vmatprep.subr.bf16.mxu0 0
    %1095 = vmatpush1.bf16.msra.mxu0 0
    %1096 = vmatprep.subr.bf16.mxu0 0
    %1097 = vmatpush1.bf16.msra.mxu0 0
    %1098 = vmatprep.subr.bf16.mxu0 0
    %1099 = vmatpush1.bf16.msra.mxu0 0
    %1100 = vmatprep.mubr.bf16.mxu0 0
    %1101 = vmatmul.mubr.bf16.gmra.mrb[0].mxu0 %v1066
    %v1102 = vpop.f32.mrb[0].mxu0
    %v1103 = vadd.f32 %v1060, %v1102
    %v1104 = vpop.f32.mrb[0].mxu0
    %v1105 = vpop.f32.mrb[0].mxu0
    %v1106 = vpop.f32.mrb[0].mxu0
    %1107 = vdwg.mxu0
    %v1108 = vmul.f32 %v1103, %v1014
    %1109 = vrot.lane.b32.xlu0 %v902, 112
    %v1110 = vpop.permute.xlu0 %1109
    %v1112 = vsel %vm388, %v1110, 0
    %1114 = vmatprep.subr.bf16.mxu0 0
    %1115 = vmatpush1.bf16.xpose.msra.mxu0 %v656
    %1116 = vmatprep.subr.bf16.mxu0 0
    %1117 = vmatpush1.bf16.xpose.msra.mxu0 %v659
    %1118 = vmatprep.subr.bf16.mxu0 0
    %1119 = vmatpush1.bf16.xpose.msra.mxu0 %v662
    %1120 = vmatprep.subr.bf16.mxu0 0
    %1121 = vmatpush1.bf16.xpose.msra.mxu0 %v665
    %1122 = vmatprep.subr.bf16.mxu0 0
    %1123 = vmatpush1.bf16.xpose.msra.mxu0 0
    %1124 = vmatprep.subr.bf16.mxu0 0
    %1125 = vmatpush1.bf16.xpose.msra.mxu0 0
    %1126 = vmatprep.subr.bf16.mxu0 0
    %1127 = vmatpush1.bf16.xpose.msra.mxu0 0
    %1128 = vmatprep.subr.bf16.mxu0 0
    %1129 = vmatpush1.bf16.xpose.msra.mxu0 0
    %1130 = vmatprep.subr.bf16.mxu0 0
    %1131 = vmatpush1.bf16.xpose.msra.mxu0 0
    %1132 = vmatprep.subr.bf16.mxu0 0
    %1133 = vmatpush1.bf16.xpose.msra.mxu0 0
    %1134 = vmatprep.subr.bf16.mxu0 0
    %1135 = vmatpush1.bf16.xpose.msra.mxu0 0
    %1136 = vmatprep.subr.bf16.mxu0 0
    %1137 = vmatpush1.bf16.xpose.msra.mxu0 0
    %1138 = vmatprep.subr.bf16.mxu0 0
    %1139 = vmatpush1.bf16.xpose.msra.mxu0 0
    %1140 = vmatprep.subr.bf16.mxu0 0
    %1141 = vmatpush1.bf16.xpose.msra.mxu0 0
    %1142 = vmatprep.subr.bf16.mxu0 0
    %1143 = vmatpush1.bf16.xpose.msra.mxu0 0
    %1144 = vmatprep.subr.bf16.mxu0 0
    %1145 = vmatpush1.bf16.xpose.msra.mxu0 0
    %1146 = vmatprep.mubr.bf16.mxu0 0
    %1147 = vmatmul.mubr.bf16.gmra.mrb[0].mxu0 %v1112
    %v1148 = vpop.f32.mrb[0].mxu0
    %v1149 = vadd.f32 0.0, %v1148
    %v1150 = vpop.f32.mrb[0].mxu0
    %v1151 = vpop.f32.mrb[0].mxu0
    %v1152 = vpop.f32.mrb[0].mxu0
    %1153 = vdwg.mxu0
    %v1154 = vmul.f32 %v1149, 0.25
    %v1155 = vsel %vm446, %v1154, -1e+30
    %1156 = vrot.lane.b32.xlu0 %v948, 112
    %v1157 = vpop.permute.xlu0 %1156
    %v1159 = vsel %vm388, %v1157, 0
    %1161 = vmatprep.subr.bf16.mxu0 0
    %1162 = vmatpush1.bf16.xpose.msra.mxu0 %v1159
    %1163 = vmatprep.subr.bf16.mxu0 0
    %1164 = vmatpush1.bf16.xpose.msra.mxu0 0
    %1165 = vmatprep.subr.bf16.mxu0 0
    %1166 = vmatpush1.bf16.xpose.msra.mxu0 0
    %1167 = vmatprep.subr.bf16.mxu0 0
    %1168 = vmatpush1.bf16.xpose.msra.mxu0 0
    %1169 = vmatprep.subr.bf16.mxu0 0
    %1170 = vmatpush1.bf16.xpose.msra.mxu0 0
    %1171 = vmatprep.subr.bf16.mxu0 0
    %1172 = vmatpush1.bf16.xpose.msra.mxu0 0
    %1173 = vmatprep.subr.bf16.mxu0 0
    %1174 = vmatpush1.bf16.xpose.msra.mxu0 0
    %1175 = vmatprep.subr.bf16.mxu0 0
    %1176 = vmatpush1.bf16.xpose.msra.mxu0 0
    %1177 = vmatprep.subr.bf16.mxu0 0
    %1178 = vmatpush1.bf16.xpose.msra.mxu0 0
    %1179 = vmatprep.subr.bf16.mxu0 0
    %1180 = vmatpush1.bf16.xpose.msra.mxu0 0
    %1181 = vmatprep.subr.bf16.mxu0 0
    %1182 = vmatpush1.bf16.xpose.msra.mxu0 0
    %1183 = vmatprep.subr.bf16.mxu0 0
    %1184 = vmatpush1.bf16.xpose.msra.mxu0 0
    %1185 = vmatprep.subr.bf16.mxu0 0
    %1186 = vmatpush1.bf16.xpose.msra.mxu0 0
    %1187 = vmatprep.subr.bf16.mxu0 0
    %1188 = vmatpush1.bf16.xpose.msra.mxu0 0
    %1189 = vmatprep.subr.bf16.mxu0 0
    %1190 = vmatpush1.bf16.xpose.msra.mxu0 0
    %1191 = vmatprep.subr.bf16.mxu0 0
    %1192 = vmatpush1.bf16.xpose.msra.mxu0 0
    %1193 = vmatprep.mubr.bf16.mxu0 0
    %1194 = vmatmul.mubr.bf16.gmra.mrb[0].mxu0 %v1112
    %v1195 = vpop.f32.mrb[0].mxu0
    %v1196 = vadd.f32 0.0, %v1195
    %v1197 = vpop.f32.mrb[0].mxu0
    %v1198 = vpop.f32.mrb[0].mxu0
    %v1199 = vpop.f32.mrb[0].mxu0
    %1200 = vdwg.mxu0
    %v1201 = vmul.f32 %v1196, 0.25
    %v1202 = vsel %vm492, %v1155, -inf
    %1203 = vmax.xlane.f32.xlu0 %v1202
    %v1204 = vpop.xlane.xlu0 %1203
    %v1205 = vsel %vm496, %v1201, -inf
    %1206 = vmax.xlane.f32.xlu0 %v1205
    %v1207 = vpop.xlane.xlu0 %1206
    %v1208 = vmax.f32 %v1204, %v1207
    %v1209 = vsub.f32 %v1155, %v1208
    %v1210 = vmul.f32 %v1209, 1.442695
    %v1211 = vpow.pop %v1210
    %v1212 = vsub.f32 %v1201, %v1208
    %v1213 = vmul.f32 %v1212, 1.442695
    %v1214 = vpow.pop %v1213
    %v1215 = vsel %vm492, %v1211, 0.0
    %1216 = vadd.xlane.f32.xlu0 %v1215
    %v1217 = vpop.xlane.xlu0 %1216
    %v1218 = vsel %vm496, %v1214, 0.0
    %1219 = vadd.xlane.f32.xlu0 %v1218
    %v1220 = vpop.xlane.xlu0 %1219
    %v1221 = vadd.f32 %v1217, %v1220
    %v1222 = vrcp.pop %v1221
    %v1223 = vmul.f32 1.0, %v1222
    %v1224 = vpack.c.bf16 %v1211, %v1211
    %v1225 = vpack.c.bf16 %v1214, %v1214
    %1226 = vrot.lane.b32.xlu0 %v948, 80
    %v1227 = vpop.permute.xlu0 %1226
    %v1229 = vsel %vm496, %v1225, 0
    %v1232 = vsel %vm524, %v1227, 0
    %1234 = vmatprep.subr.bf16.mxu0 0
    %1235 = vmatpush1.bf16.msra.mxu0 %v1232
    %1236 = vmatprep.subr.bf16.mxu0 0
    %1237 = vmatpush1.bf16.msra.mxu0 0
    %1238 = vmatprep.subr.bf16.mxu0 0
    %1239 = vmatpush1.bf16.msra.mxu0 0
    %1240 = vmatprep.subr.bf16.mxu0 0
    %1241 = vmatpush1.bf16.msra.mxu0 0
    %1242 = vmatprep.subr.bf16.mxu0 0
    %1243 = vmatpush1.bf16.msra.mxu0 0
    %1244 = vmatprep.subr.bf16.mxu0 0
    %1245 = vmatpush1.bf16.msra.mxu0 0
    %1246 = vmatprep.subr.bf16.mxu0 0
    %1247 = vmatpush1.bf16.msra.mxu0 0
    %1248 = vmatprep.subr.bf16.mxu0 0
    %1249 = vmatpush1.bf16.msra.mxu0 0
    %1250 = vmatprep.subr.bf16.mxu0 0
    %1251 = vmatpush1.bf16.msra.mxu0 0
    %1252 = vmatprep.subr.bf16.mxu0 0
    %1253 = vmatpush1.bf16.msra.mxu0 0
    %1254 = vmatprep.subr.bf16.mxu0 0
    %1255 = vmatpush1.bf16.msra.mxu0 0
    %1256 = vmatprep.subr.bf16.mxu0 0
    %1257 = vmatpush1.bf16.msra.mxu0 0
    %1258 = vmatprep.subr.bf16.mxu0 0
    %1259 = vmatpush1.bf16.msra.mxu0 0
    %1260 = vmatprep.subr.bf16.mxu0 0
    %1261 = vmatpush1.bf16.msra.mxu0 0
    %1262 = vmatprep.subr.bf16.mxu0 0
    %1263 = vmatpush1.bf16.msra.mxu0 0
    %1264 = vmatprep.subr.bf16.mxu0 0
    %1265 = vmatpush1.bf16.msra.mxu0 0
    %1266 = vmatprep.mubr.bf16.mxu0 0
    %1267 = vmatmul.mubr.bf16.gmra.mrb[0].mxu0 %v1229
    %v1268 = vpop.f32.mrb[0].mxu0
    %v1269 = vadd.f32 0.0, %v1268
    %v1270 = vpop.f32.mrb[0].mxu0
    %v1271 = vpop.f32.mrb[0].mxu0
    %v1272 = vpop.f32.mrb[0].mxu0
    %1273 = vdwg.mxu0
    %v1275 = vsel %vm492, %v1224, 0
    %1277 = vmatprep.subr.bf16.mxu0 0
    %1278 = vmatpush1.bf16.msra.mxu0 %v828
    %1279 = vmatprep.subr.bf16.mxu0 0
    %1280 = vmatpush1.bf16.msra.mxu0 %v830
    %1281 = vmatprep.subr.bf16.mxu0 0
    %1282 = vmatpush1.bf16.msra.mxu0 %v832
    %1283 = vmatprep.subr.bf16.mxu0 0
    %1284 = vmatpush1.bf16.msra.mxu0 %v834
    %1285 = vmatprep.subr.bf16.mxu0 0
    %1286 = vmatpush1.bf16.msra.mxu0 0
    %1287 = vmatprep.subr.bf16.mxu0 0
    %1288 = vmatpush1.bf16.msra.mxu0 0
    %1289 = vmatprep.subr.bf16.mxu0 0
    %1290 = vmatpush1.bf16.msra.mxu0 0
    %1291 = vmatprep.subr.bf16.mxu0 0
    %1292 = vmatpush1.bf16.msra.mxu0 0
    %1293 = vmatprep.subr.bf16.mxu0 0
    %1294 = vmatpush1.bf16.msra.mxu0 0
    %1295 = vmatprep.subr.bf16.mxu0 0
    %1296 = vmatpush1.bf16.msra.mxu0 0
    %1297 = vmatprep.subr.bf16.mxu0 0
    %1298 = vmatpush1.bf16.msra.mxu0 0
    %1299 = vmatprep.subr.bf16.mxu0 0
    %1300 = vmatpush1.bf16.msra.mxu0 0
    %1301 = vmatprep.subr.bf16.mxu0 0
    %1302 = vmatpush1.bf16.msra.mxu0 0
    %1303 = vmatprep.subr.bf16.mxu0 0
    %1304 = vmatpush1.bf16.msra.mxu0 0
    %1305 = vmatprep.subr.bf16.mxu0 0
    %1306 = vmatpush1.bf16.msra.mxu0 0
    %1307 = vmatprep.subr.bf16.mxu0 0
    %1308 = vmatpush1.bf16.msra.mxu0 0
    %1309 = vmatprep.mubr.bf16.mxu0 0
    %1310 = vmatmul.mubr.bf16.gmra.mrb[0].mxu0 %v1275
    %v1311 = vpop.f32.mrb[0].mxu0
    %v1312 = vadd.f32 %v1269, %v1311
    %v1313 = vpop.f32.mrb[0].mxu0
    %v1314 = vpop.f32.mrb[0].mxu0
    %v1315 = vpop.f32.mrb[0].mxu0
    %1316 = vdwg.mxu0
    %v1317 = vmul.f32 %v1312, %v1223
    %1319 = vrot.lane.b32.xlu0 %v1317, 16
    %v1320 = vpop.permute.xlu0 %1319
    %v1322 = vsel %vm388, %v1108, %v1320
    %v1323 = vpack.c.bf16 %v1322, %v900
    %1324 = vrot.lane.b32.xlu0 %v196, 32
    %v1325 = vpop.permute.xlu0 %1324
    %1326 = vrot.lane.b32.xlu0 %v197, 32
    %v1327 = vpop.permute.xlu0 %1326
    %v1331 = vsel %vm158, %v1323, 0
    %1333 = vmatprep.subr.bf16.mxu0 0
    %1334 = vmatpush1.bf16.msra.mxu0 %v1325
    %1335 = vmatprep.subr.bf16.mxu0 0
    %1336 = vmatpush1.bf16.msra.mxu0 %v1327
    %1337 = vmatprep.subr.bf16.mxu0 0
    %1338 = vmatpush1.bf16.msra.mxu0 0
    %1339 = vmatprep.subr.bf16.mxu0 0
    %1340 = vmatpush1.bf16.msra.mxu0 0
    %1341 = vmatprep.subr.bf16.mxu0 0
    %1342 = vmatpush1.bf16.msra.mxu0 0
    %1343 = vmatprep.subr.bf16.mxu0 0
    %1344 = vmatpush1.bf16.msra.mxu0 0
    %1345 = vmatprep.subr.bf16.mxu0 0
    %1346 = vmatpush1.bf16.msra.mxu0 0
    %1347 = vmatprep.subr.bf16.mxu0 0
    %1348 = vmatpush1.bf16.msra.mxu0 0
    %1349 = vmatprep.subr.bf16.mxu0 0
    %1350 = vmatpush1.bf16.msra.mxu0 0
    %1351 = vmatprep.subr.bf16.mxu0 0
    %1352 = vmatpush1.bf16.msra.mxu0 0
    %1353 = vmatprep.subr.bf16.mxu0 0
    %1354 = vmatpush1.bf16.msra.mxu0 0
    %1355 = vmatprep.subr.bf16.mxu0 0
    %1356 = vmatpush1.bf16.msra.mxu0 0
    %1357 = vmatprep.subr.bf16.mxu0 0
    %1358 = vmatpush1.bf16.msra.mxu0 0
    %1359 = vmatprep.subr.bf16.mxu0 0
    %1360 = vmatpush1.bf16.msra.mxu0 0
    %1361 = vmatprep.subr.bf16.mxu0 0
    %1362 = vmatpush1.bf16.msra.mxu0 0
    %1363 = vmatprep.subr.bf16.mxu0 0
    %1364 = vmatpush1.bf16.msra.mxu0 0
    %1365 = vmatprep.mubr.bf16.mxu0 0
    %1366 = vmatmul.mubr.bf16.gmra.mrb[0].mxu0 %v1331
    %v1367 = vpop.f32.mrb[0].mxu0
    %v1368 = vadd.f32 %v178, %v1367
    %v1369 = vpop.f32.mrb[0].mxu0
    %v1370 = vpop.f32.mrb[0].mxu0
    %v1371 = vadd.f32 %v178, %v1370
    %v1372 = vpop.f32.mrb[0].mxu0
    %1373 = vdwg.mxu0
    %v1374 = vadd.f32 %v150, %v1368
    %v1375 = vadd.f32 %v155, %v1371
    %v1376 = vsel %vm158, %v1374, 0.0
    %1377 = vadd.xlane.f32.xlu0 %v1376
    %v1378 = vpop.xlane.xlu0 %1377
    %v1379 = vsel %vm158, %v1375, 0.0
    %1380 = vadd.xlane.f32.xlu0 %v1379
    %v1381 = vpop.xlane.xlu0 %1380
    %v1382 = vrcp.pop 32.0
    %v1383 = vmul.f32 %v1378, %v1382
    %v1384 = vmul.f32 %v1381, %v1382
    %v1385 = vsub.f32 %v1374, %v1383
    %v1386 = vsub.f32 %v1375, %v1384
    %v1387 = vmul.f32 %v1385, %v1385
    %v1388 = vmul.f32 %v1386, %v1386
    %v1389 = vsel %vm158, %v1387, 0.0
    %1390 = vadd.xlane.f32.xlu0 %v1389
    %v1391 = vpop.xlane.xlu0 %1390
    %v1392 = vsel %vm158, %v1388, 0.0
    %1393 = vadd.xlane.f32.xlu0 %v1392
    %v1394 = vpop.xlane.xlu0 %1393
    %v1395 = vmul.f32 %v1391, %v1382
    %v1396 = vmul.f32 %v1394, %v1382
    %v1397 = vadd.f32 %v1395, 1e-05
    %v1398 = vadd.f32 %v1396, 1e-05
    %v1399 = vrsqrt.pop %v1397
    %v1400 = vrsqrt.pop %v1398
    %v1401 = vmul.f32 %v1385, %v1399
    %v1402 = vmul.f32 %v1386, %v1400
    %v1403 = vmul.f32 %v1401, %v179
    %v1404 = vmul.f32 %v1402, %v179
    %v1405 = vadd.f32 %v1403, %v180
    %v1406 = vadd.f32 %v1404, %v180
    %v1407 = vpack.c.bf16 %v1406, %v1405
    %v1412 = vunpack.c.l.b16 %v164
    %v1413 = vunpack.c.l.b16 %v165
    %v1414 = vunpack.c.l.b16 %v166
    %v1415 = vunpack.c.l.b16 %v167
    %v1416 = vpack.c.b16 %v1413, %v1412
    %v1417 = vpack.c.b16 %v1415, %v1414
    %v1421 = vsel %vm158, %v1407, 0
    %1423 = vmatprep.subr.bf16.mxu0 0
    %1424 = vmatpush1.bf16.msra.mxu0 %v1416
    %1425 = vmatprep.subr.bf16.mxu0 0
    %1426 = vmatpush1.bf16.msra.mxu0 %v1417
    %1427 = vmatprep.subr.bf16.mxu0 0
    %1428 = vmatpush1.bf16.msra.mxu0 0
    %1429 = vmatprep.subr.bf16.mxu0 0
    %1430 = vmatpush1.bf16.msra.mxu0 0
    %1431 = vmatprep.subr.bf16.mxu0 0
    %1432 = vmatpush1.bf16.msra.mxu0 0
    %1433 = vmatprep.subr.bf16.mxu0 0
    %1434 = vmatpush1.bf16.msra.mxu0 0
    %1435 = vmatprep.subr.bf16.mxu0 0
    %1436 = vmatpush1.bf16.msra.mxu0 0
    %1437 = vmatprep.subr.bf16.mxu0 0
    %1438 = vmatpush1.bf16.msra.mxu0 0
    %1439 = vmatprep.subr.bf16.mxu0 0
    %1440 = vmatpush1.bf16.msra.mxu0 0
    %1441 = vmatprep.subr.bf16.mxu0 0
    %1442 = vmatpush1.bf16.msra.mxu0 0
    %1443 = vmatprep.subr.bf16.mxu0 0
    %1444 = vmatpush1.bf16.msra.mxu0 0
    %1445 = vmatprep.subr.bf16.mxu0 0
    %1446 = vmatpush1.bf16.msra.mxu0 0
    %1447 = vmatprep.subr.bf16.mxu0 0
    %1448 = vmatpush1.bf16.msra.mxu0 0
    %1449 = vmatprep.subr.bf16.mxu0 0
    %1450 = vmatpush1.bf16.msra.mxu0 0
    %1451 = vmatprep.subr.bf16.mxu0 0
    %1452 = vmatpush1.bf16.msra.mxu0 0
    %1453 = vmatprep.subr.bf16.mxu0 0
    %1454 = vmatpush1.bf16.msra.mxu0 0
    %1455 = vmatprep.mubr.bf16.mxu0 0
    %1456 = vmatmul.mubr.bf16.gmra.mrb[0].mxu0 %v1421
    %v1457 = vpop.f32.mrb[0].mxu0
    %v1458 = vadd.f32 %v181, %v1457
    %v1459 = vpop.f32.mrb[0].mxu0
    %v1460 = vpop.f32.mrb[0].mxu0
    %v1461 = vadd.f32 %v181, %v1460
    %v1462 = vpop.f32.mrb[0].mxu0
    %1463 = vdwg.mxu0
    %v1464 = vmax.f32 %v1458, 0.0
    %v1465 = vmax.f32 %v1461, 0.0
    %v1466 = vpack.c.bf16 %v1465, %v1464
    %v1471 = vunpack.c.l.b16 %v168
    %v1472 = vunpack.c.l.b16 %v169
    %v1473 = vunpack.c.l.b16 %v170
    %v1474 = vunpack.c.l.b16 %v171
    %v1475 = vpack.c.b16 %v1472, %v1471
    %v1476 = vpack.c.b16 %v1474, %v1473
    %1479 = vmatprep.subr.bf16.mxu0 0
    %1480 = vmatpush1.bf16.xpose.msra.mxu0 %v1475
    %1481 = vmatprep.subr.bf16.mxu0 0
    %1482 = vmatpush1.bf16.xpose.msra.mxu0 %v1476
    %1483 = vmatprep.subr.bf16.mxu0 0
    %1484 = vmatpush1.bf16.xpose.msra.mxu0 0
    %1485 = vmatprep.subr.bf16.mxu0 0
    %1486 = vmatpush1.bf16.xpose.msra.mxu0 0
    %1487 = vmatprep.subr.bf16.mxu0 0
    %1488 = vmatpush1.bf16.xpose.msra.mxu0 0
    %1489 = vmatprep.subr.bf16.mxu0 0
    %1490 = vmatpush1.bf16.xpose.msra.mxu0 0
    %1491 = vmatprep.subr.bf16.mxu0 0
    %1492 = vmatpush1.bf16.xpose.msra.mxu0 0
    %1493 = vmatprep.subr.bf16.mxu0 0
    %1494 = vmatpush1.bf16.xpose.msra.mxu0 0
    %1495 = vmatprep.subr.bf16.mxu0 0
    %1496 = vmatpush1.bf16.xpose.msra.mxu0 0
    %1497 = vmatprep.subr.bf16.mxu0 0
    %1498 = vmatpush1.bf16.xpose.msra.mxu0 0
    %1499 = vmatprep.subr.bf16.mxu0 0
    %1500 = vmatpush1.bf16.xpose.msra.mxu0 0
    %1501 = vmatprep.subr.bf16.mxu0 0
    %1502 = vmatpush1.bf16.xpose.msra.mxu0 0
    %1503 = vmatprep.subr.bf16.mxu0 0
    %1504 = vmatpush1.bf16.xpose.msra.mxu0 0
    %1505 = vmatprep.subr.bf16.mxu0 0
    %1506 = vmatpush1.bf16.xpose.msra.mxu0 0
    %1507 = vmatprep.subr.bf16.mxu0 0
    %1508 = vmatpush1.bf16.xpose.msra.mxu0 0
    %1509 = vmatprep.subr.bf16.mxu0 0
    %1510 = vmatpush1.bf16.xpose.msra.mxu0 0
    %1511 = vmatprep.mubr.bf16.mxu0 0
    %1512 = vmatmul.mubr.bf16.gmra.mrb[0].mxu0 %v1466
    %v1513 = vpop.f32.mrb[0].mxu0
    %v1514 = vadd.f32 %v182, %v1513
    %v1515 = vpop.f32.mrb[0].mxu0
    %v1516 = vpop.f32.mrb[0].mxu0
    %v1517 = vadd.f32 %v182, %v1516
    %v1518 = vpop.f32.mrb[0].mxu0
    %1519 = vdwg.mxu0
    %v1520 = vadd.f32 %v1405, %v1514
    %v1521 = vadd.f32 %v1406, %v1517
    %v1522 = vsel %vm158, %v1520, 0.0
    %1523 = vadd.xlane.f32.xlu0 %v1522
    %v1524 = vpop.xlane.xlu0 %1523
    %v1525 = vsel %vm158, %v1521, 0.0
    %1526 = vadd.xlane.f32.xlu0 %v1525
    %v1527 = vpop.xlane.xlu0 %1526
    %v1528 = vmul.f32 %v1524, %v1382
    %v1529 = vmul.f32 %v1527, %v1382
    %v1530 = vsub.f32 %v1520, %v1528
    %v1531 = vsub.f32 %v1521, %v1529
    %v1532 = vmul.f32 %v1530, %v1530
    %v1533 = vmul.f32 %v1531, %v1531
    %v1534 = vsel %vm158, %v1532, 0.0
    %1535 = vadd.xlane.f32.xlu0 %v1534
    %v1536 = vpop.xlane.xlu0 %1535
    %v1537 = vsel %vm158, %v1533, 0.0
    %1538 = vadd.xlane.f32.xlu0 %v1537
    %v1539 = vpop.xlane.xlu0 %1538
    %v1540 = vmul.f32 %v1536, %v1382
    %v1541 = vmul.f32 %v1539, %v1382
    %v1542 = vadd.f32 %v1540, 1e-05
    %v1543 = vadd.f32 %v1541, 1e-05
    %v1544 = vrsqrt.pop %v1542
    %v1545 = vrsqrt.pop %v1543
    %v1546 = vmul.f32 %v1530, %v1544
    %v1547 = vmul.f32 %v1531, %v1545
    %v1548 = vmul.f32 %v1546, %v183
    %v1549 = vmul.f32 %v1547, %v183
    %v1550 = vadd.f32 %v1548, %v184
    %v1551 = vadd.f32 %v1549, %v184
    %v1552 = vpack.c.bf16 %v1551, %v1550
    %v1554 = vlaneseq
    %v1555 = vshrl.u32 %v1554, 7
    %v1556 = vsub.s32 0, %v1555
    %v1557 = vrot.slane %v186, %v1556
    %v1558 = vlaneseq
    %v1559 = vshrl.u32 %v1558, 7
    %v1560 = vsub.s32 1, %v1559
    %v1561 = vrot.slane %v186, %v1560
    %v1568 = vunpack.c.l.b16 %v172
    %v1569 = vunpack.c.h.b16 %v172
    %v1570 = vunpack.c.l.b16 %v173
    %v1571 = vunpack.c.h.b16 %v173
    %v1572 = vunpack.c.l.b16 %v174
    %v1573 = vunpack.c.h.b16 %v174
    %v1574 = vunpack.c.l.b16 %v175
    %v1575 = vunpack.c.h.b16 %v175
    %v1576 = vpack.c.b16 %v1570, %v1568
    %v1577 = vpack.c.b16 %v1571, %v1569
    %v1578 = vpack.c.b16 %v1574, %v1572
    %v1579 = vpack.c.b16 %v1575, %v1573
    %v1585 = vsel %vm158, %v1552, 0
    %1587 = vmatprep.subr.bf16.mxu0 %v1577
    %1588 = vmatpush1.bf16.msra.mxu0 %v1576
    %1589 = vmatprep.subr.bf16.mxu0 %v1579
    %1590 = vmatpush1.bf16.msra.mxu0 %v1578
    %1591 = vmatprep.subr.bf16.mxu0 0
    %1592 = vmatpush1.bf16.msra.mxu0 0
    %1593 = vmatprep.subr.bf16.mxu0 0
    %1594 = vmatpush1.bf16.msra.mxu0 0
    %1595 = vmatprep.subr.bf16.mxu0 0
    %1596 = vmatpush1.bf16.msra.mxu0 0
    %1597 = vmatprep.subr.bf16.mxu0 0
    %1598 = vmatpush1.bf16.msra.mxu0 0
    %1599 = vmatprep.subr.bf16.mxu0 0
    %1600 = vmatpush1.bf16.msra.mxu0 0
    %1601 = vmatprep.subr.bf16.mxu0 0
    %1602 = vmatpush1.bf16.msra.mxu0 0
    %1603 = vmatprep.subr.bf16.mxu0 0
    %1604 = vmatpush1.bf16.msra.mxu0 0
    %1605 = vmatprep.subr.bf16.mxu0 0
    %1606 = vmatpush1.bf16.msra.mxu0 0
    %1607 = vmatprep.subr.bf16.mxu0 0
    %1608 = vmatpush1.bf16.msra.mxu0 0
    %1609 = vmatprep.subr.bf16.mxu0 0
    %1610 = vmatpush1.bf16.msra.mxu0 0
    %1611 = vmatprep.subr.bf16.mxu0 0
    %1612 = vmatpush1.bf16.msra.mxu0 0
    %1613 = vmatprep.subr.bf16.mxu0 0
    %1614 = vmatpush1.bf16.msra.mxu0 0
    %1615 = vmatprep.subr.bf16.mxu0 0
    %1616 = vmatpush1.bf16.msra.mxu0 0
    %1617 = vmatprep.subr.bf16.mxu0 0
    %1618 = vmatpush1.bf16.msra.mxu0 0
    %1619 = vmatprep.mubr.bf16.mxu0 0
    %1620 = vmatmul.mubr.bf16.gmra.mrb[0].mxu0 %v1585
    %v1621 = vpop.f32.mrb[0].mxu0
    %v1622 = vadd.f32 %v1557, %v1621
    %v1623 = vpop.f32.mrb[0].mxu0
    %v1624 = vadd.f32 %v1561, %v1623
    %v1625 = vpop.f32.mrb[0].mxu0
    %v1626 = vadd.f32 %v1557, %v1625
    %v1627 = vpop.f32.mrb[0].mxu0
    %v1628 = vadd.f32 %v1561, %v1627
    %1629 = vdwg.mxu0
    %1630 = vst [vmem:[#allocation4] sm:$0xff] %v1622
    %1631 = vst [vmem:[#allocation4 + $0x8] sm:$0xff] %v1624
    %1632 = vst [vmem:[#allocation4 + $0x10] sm:$0xff] %v1626
    %1633 = vst [vmem:[#allocation4 + $0x18] sm:$0xff] %v1628
    %1634 = vst [vmem:[%s7] sm:$0xff] %v901
    // Predicated region
    $region22: #{xl_forward.1} parent=1 // pred_check
      _
    $region23: #{xl_forward.1} parent=1 // pred_check_branch
      %1636 = sbr.rel (0) target = $region25
    $region24: #{xl_forward.1} parent=1 // pred_region
      %s1638 = ssub.s32 512, 512
      %1639 = vsyncadd [#allocation5], %s1638
      %s1640 = sshll.u32 [#allocation4], 4
      %s1641 = int_to_ptr.vmem [resolvable:$true] %s1640
      %1646 = dma.vmem_to_hbm [thread:$0]  %s1641, 512, %s6, [#allocation5], 256, 256, 16
    $region25: #{xl_forward.1} parent=1 // pred_fallthru
      _
    // Predicated region
    $region26: #{xl_forward.1} parent=1 // pred_check
      _
    $region27: #{xl_forward.1} parent=1 // pred_check_branch
      %1648 = sbr.rel (0) target = $region29
    $region28: #{xl_forward.1} parent=1 // pred_region
      _
    $region29: #{xl_forward.1} parent=1 // pred_fallthru
      _
    // Predicated region
    $region30: #{xl_forward.1} parent=1 // pred_check
      _
    $region31: #{xl_forward.1} parent=1 // pred_check_branch
      %1650 = sbr.rel (0) target = $region33
    $region32: #{xl_forward.1} parent=1 // pred_region
      _
    $region33: #{xl_forward.1} parent=1 // pred_fallthru
      _
    // Predicated region
    $region34: #{xl_forward.1} parent=1 // pred_check
      _
    $region35: #{xl_forward.1} parent=1 // pred_check_branch
      %1652 = sbr.rel (0) target = $region37
    $region36: #{xl_forward.1} parent=1 // pred_region
      %1653 = dma.done [#allocation5], 512
    $region37: #{xl_forward.1} parent=1 // pred_fallthru
      _
    // Predicated region
    $region38: #{xl_forward.1} parent=1 // pred_check
      _
    $region39: #{xl_forward.1} parent=1 // pred_check_branch
      %1655 = sbr.rel (0) target = $region41
    $region40: #{xl_forward.1} parent=1 // pred_region
      _
    $region41: #{xl_forward.1} parent=1 // pred_fallthru
      _
    // Predicated region
    $region42: #{xl_forward.1} parent=1 // pred_check
      _
    $region43: #{xl_forward.1} parent=1 // pred_check_branch
      %1657 = sbr.rel (0) target = $region45
    $region44: #{xl_forward.1} parent=1 // pred_region
      _
    $region45: #{xl_forward.1} parent=1 // pred_fallthru
      _
    %1658 = vsyncpa [#allocation5], 1

</llo_original>
